<compile_context>
chip_gen: v7x
topology: tpu7x:2x2x1
jax: 0.10.0
libtpu: 0.0.40
codegen_flags: <defaults>
</compile_context>

<pallas_src>
import jax
import jax.numpy as jnp
import numpy as np
from jax.experimental import pallas as pl
from jax.experimental.pallas import tpu as pltpu


# ------------------------------ Pallas kernel -------------------------------

def _lenet5_kernel(xs_ref,            # (TB*28, 160)   C1 input slab
                   t1_ref,            # (160, 168)     banded conv1 weight
                   b1_ref,            # (1, 128)       conv1 bias (pooled layout)
                   pr1_ref,           # (2*H1, TB*28)  S2 merged row selector
                   pc1_ref,           # (168, 256)     S2 merged column selector
                   t3_ref,            # (5, 128, 160)  banded conv3 weight
                   b3_ref,            # (1, 160)       conv3 bias
                   pc3_ref,           # (160, 256)     S4 merged column selector
                   pr3_ref,           # (10*SB, Rc3)   S4 merged row selector
                   w5_ref,            # (5, 128, 120)  F5 weight, per pooled row h
                   b5_ref,            # (1, 120)
                   w67_ref,           # (120, 10)      F6 o F7 fused weight
                   b67_ref,           # (1, 10)        F6 o F7 fused bias
                   o_ref):            # (TB, 10)
    f32 = jnp.float32
    tb = o_ref.shape[0]                     # images in this batch tile
    h1 = pr1_ref.shape[0] // 2              # S2 row-pool half height
    rc3 = pr3_ref.shape[1]                  # rows of the C3 output slab
    sb = pr3_ref.shape[0] // 10             # per-h row stride after S4

    # ---- C1: one (TB*28, 160) @ (160, 168) matmul (batch folded into M) ----
    c1 = jnp.dot(xs_ref[...], t1_ref[...], preferred_element_type=f32)

    # ---- S2: merged even/odd row pool, then merged even/odd column pool ----
    rp = jnp.dot(pr1_ref[...], c1, preferred_element_type=f32)
    r1 = jnp.maximum(rp[:h1], rp[h1:])                     # sublane-aligned max
    cp = jnp.dot(r1, pc1_ref[...], preferred_element_type=f32)
    s2 = jnp.maximum(cp[:, :128], cp[:, 128:]) + b1_ref[...]   # (H1, 128)

    # ---- C3: 5 banded matmuls over kh (batch in M); bias added once --------
    # TODO(synk): C3 could also be collapsed to one matmul via an in-kernel
    # input slab, but its 84-wide channel blocks are not 128-aligned (review
    # marked it low priority).
    c3 = jnp.dot(s2[0:rc3, :], t3_ref[0], preferred_element_type=f32)
    for kh in range(1, 5):
        c3 = c3 + jnp.dot(s2[kh:kh + rc3, :], t3_ref[kh],
                          preferred_element_type=f32)
    c3 = c3 + b3_ref[...]                                  # (Rc3, 160)

    # ---- S4: merged column pool, then merged row pool (h-major layout) -----
    ccp = jnp.dot(c3, pc3_ref[...], preferred_element_type=f32)
    c3h = jnp.maximum(ccp[:, :128], ccp[:, 128:])          # (Rc3, 128)
    rp3 = jnp.dot(pr3_ref[...], c3h, preferred_element_type=f32)
    half3 = rp3.shape[0] // 2
    a = jnp.maximum(jnp.maximum(rp3[:half3], rp3[half3:]), 0.0)  # relu(flatten)

    # ---- F5: 5 accumulating, aligned (SB, 128) @ (128, 120) matmuls --------
    h5 = jnp.dot(a[0:sb], w5_ref[0], preferred_element_type=f32)
    for h in range(1, 5):
        h5 = h5 + jnp.dot(a[h * sb:(h + 1) * sb], w5_ref[h],
                          preferred_element_type=f32)
    h5 = jnp.maximum(h5 + b5_ref[...], 0.0)                # relu before F6

    # ---- F6 o F7 (fused affine; no activation between them in the module) --
    out = jnp.dot(h5, w67_ref[...], preferred_element_type=f32) + b67_ref[...]
    o_ref[...] = out[0:tb, :]


# --------------------------- one-time weight prep ---------------------------

def _round_up(v, m):
    return (v + m - 1) // m * m


def prepare_params(p, batch_tile):
    """Repack PyTorch-layout parameters into kernel operands (done ONCE)."""
    B = int(batch_tile)
    w1 = np.asarray(p["c1_w"], np.float32); b1 = np.asarray(p["c1_b"], np.float32)
    w3 = np.asarray(p["c3_w"], np.float32); b3 = np.asarray(p["c3_b"], np.float32)
    w5 = np.asarray(p["f5_w"], np.float32); b5 = np.asarray(p["f5_b"], np.float32)
    w6 = np.asarray(p["f6_w"], np.float32); b6 = np.asarray(p["f6_b"], np.float32)
    w7 = np.asarray(p["f7_w"], np.float32); b7 = np.asarray(p["f7_b"], np.float32)

    # C1 as ONE matmul against the (kh, w)-flattened input slab:
    #   t1f[kh*32 + ow + kw, co*28 + ow] = w1[co, 0, kh, kw]
    t1f = np.zeros((5 * 32, 6 * 28), np.float32)
    for kh in range(5):
        for co in range(6):
            for ow in range(28):
                t1f[kh * 32 + ow:kh * 32 + ow + 5, co * 28 + ow] = w1[co, 0, kh, :]

    # conv1 bias, deferred to after the S2 max-pool (per-channel constant
    # commutes with max), broadcast over the pooled (ci, pw) lane layout.
    b1s2 = np.zeros((1, 128), np.float32)
    for ci in range(6):
        b1s2[0, ci * 14:ci * 14 + 14] = b1[ci]

    # S2 merged even/odd ROW selector: rows [0, B*14) pick even input rows,
    # rows [H1, H1 + B*14) pick odd rows; the kernel maxes the two halves.
    H1 = _round_up(B * 14, 8)
    pr1 = np.zeros((2 * H1, B * 28), np.float32)
    for n in range(B):
        for ph in range(14):
            pr1[n * 14 + ph, n * 28 + 2 * ph] = 1.0
            pr1[H1 + n * 14 + ph, n * 28 + 2 * ph + 1] = 1.0

    # S2 merged even/odd COLUMN selector: even picks -> lanes [0, 84),
    # odd picks -> lanes [128, 212); the kernel maxes the two lane halves.
    pc1 = np.zeros((6 * 28, 256), np.float32)
    for ci in range(6):
        for pw in range(14):
            pc1[ci * 28 + 2 * pw, ci * 14 + pw] = 1.0
            pc1[ci * 28 + 2 * pw + 1, 128 + ci * 14 + pw] = 1.0

    # C3 banded weights (kh loop stays; K padded to 128 lanes):
    #   t3[kh, ci*14 + ow + kw, co*10 + ow] = w3[co, ci, kh, kw]
    t3 = np.zeros((5, 128, 16 * 10), np.float32)
    for kh in range(5):
        for co in range(16):
            for ci in range(6):
                for ow in range(10):
                    t3[kh, ci * 14 + ow:ci * 14 + ow + 5, co * 10 + ow] = \
                        w3[co, ci, kh, :]
    b3r = np.repeat(b3, 10)[None, :].astype(np.float32)           # (1, 160)

    # S4 merged even/odd COLUMN selector (even -> [0,80), odd -> [128,208)).
    pc3 = np.zeros((16 * 10, 256), np.float32)
    for co in range(16):
        for qw in range(5):
            pc3[co * 10 + 2 * qw, co * 5 + qw] = 1.0
            pc3[co * 10 + 2 * qw + 1, 128 + co * 5 + qw] = 1.0

    # S4 merged even/odd ROW selector producing an h-major, SB-row-strided
    # layout (row = h*SB + n) so the F5 per-h weight slabs use aligned slices.
    SB = _round_up(B, 8)
    Rc3 = 14 * (B - 1) + 10
    half3 = 5 * SB
    pr3 = np.zeros((2 * half3, Rc3), np.float32)
    for n in range(B):
        for h in range(5):
            pr3[h * SB + n, n * 14 + 2 * h] = 1.0
            pr3[half3 + h * SB + n, n * 14 + 2 * h + 1] = 1.0

    # F5 regrouped to the pooled (co, qw) lane layout, split per pooled row h,
    # K padded 80 -> 128:  w5p[h, co*5 + qw, j] = w5[j, co*25 + h*5 + qw]
    w5r = w5.reshape(120, 16, 5, 5)
    w5p = np.zeros((5, 128, 120), np.float32)
    for h in range(5):
        w5p[h, :80, :] = np.ascontiguousarray(
            w5r[:, :, h, :].transpose(1, 2, 0).reshape(80, 120))
    b5r = b5[None, :].astype(np.float32)

    # F6 and F7 have no activation between them -> fold into one affine map.
    w67 = (w6.T @ w7.T).astype(np.float32)                        # (120, 10)
    b67 = (b6 @ w7.T + b7)[None, :].astype(np.float32)            # (1, 10)

    return {
        "t1f": jnp.asarray(t1f), "b1s2": jnp.asarray(b1s2),
        "pr1": jnp.asarray(pr1), "pc1": jnp.asarray(pc1),
        "t3": jnp.asarray(t3), "b3r": jnp.asarray(b3r),
        "pc3": jnp.asarray(pc3), "pr3": jnp.asarray(pr3),
        "w5p": jnp.asarray(w5p), "b5r": jnp.asarray(b5r),
        "w67": jnp.asarray(w67), "b67": jnp.asarray(b67),
    }


# ------------------------------- forward pass -------------------------------

@jax.jit
def lenet5_forward(x, kp):
    n = x.shape[0]
    tb = kp["pr1"].shape[1] // 28              # images per batch tile (static)
    assert n % tb == 0, "batch must be a multiple of the prepared batch tile"
    x2 = x.reshape(n, 32, 32)                  # Cin == 1 -> (N, 32, 32)
    # C1 input slab: xs[n*28 + oh, kh*32 + w] = x[n, 0, kh + oh, w]
    xs = jnp.stack([x2[:, kh:kh + 28, :] for kh in range(5)], axis=2)
    xs = xs.reshape(n * 28, 5 * 32)

    weights = (kp["t1f"], kp["b1s2"], kp["pr1"], kp["pc1"],
               kp["t3"], kp["b3r"], kp["pc3"], kp["pr3"],
               kp["w5p"], kp["b5r"], kp["w67"], kp["b67"])
    # Constant index_maps -> weights stay VMEM-resident across batch tiles.
    weight_specs = [pl.BlockSpec(w.shape, lambda i, nd=w.ndim: (0,) * nd)
                    for w in weights]

    return pl.pallas_call(
        _lenet5_kernel,
        out_shape=jax.ShapeDtypeStruct((n, 10), jnp.float32),
        grid=(n // tb,),
        in_specs=[pl.BlockSpec((tb * 28, 160), lambda i: (i, 0))] + weight_specs,
        out_specs=pl.BlockSpec((tb, 10), lambda i: (i, 0)),
        compiler_params=pltpu.CompilerParams(
            dimension_semantics=("parallel",)),
    )(xs, *weights)


# -------------------------- params & reference -----------------------------

def init_params(key):
    def uniform(k, shape, fan_in):
        bound = 1.0 / np.sqrt(fan_in)
        return jax.random.uniform(k, shape, jnp.float32, -bound, bound)
    ks = jax.random.split(key, 10)
    return {
        "c1_w": uniform(ks[0], (6, 1, 5, 5), 1 * 25),
        "c1_b": uniform(ks[1], (6,), 1 * 25),
        "c3_w": uniform(ks[2], (16, 6, 5, 5), 6 * 25),
        "c3_b": uniform(ks[3], (16,), 6 * 25),
        "f5_w": uniform(ks[4], (120, 400), 400),
        "f5_b": uniform(ks[5], (120,), 400),
        "f6_w": uniform(ks[6], (84, 120), 120),
        "f6_b": uniform(ks[7], (84,), 120),
        "f7_w": uniform(ks[8], (10, 84), 84),
        "f7_b": uniform(ks[9], (10,), 84),
    }


def lenet5_reference(x, p):
    dn = ("NCHW", "OIHW", "NCHW")
    prec = jax.lax.Precision.HIGHEST
    y = jax.lax.conv_general_dilated(x, p["c1_w"], (1, 1), "VALID",
                                     dimension_numbers=dn, precision=prec)
    y = y + p["c1_b"].reshape(1, -1, 1, 1)
    y = jax.lax.reduce_window(y, -jnp.inf, jax.lax.max,
                              (1, 1, 2, 2), (1, 1, 2, 2), "VALID")
    y = jax.lax.conv_general_dilated(y, p["c3_w"], (1, 1), "VALID",
                                     dimension_numbers=dn, precision=prec)
    y = y + p["c3_b"].reshape(1, -1, 1, 1)
    y = jax.lax.reduce_window(y, -jnp.inf, jax.lax.max,
                              (1, 1, 2, 2), (1, 1, 2, 2), "VALID")
    y = y.reshape(y.shape[0], -1)
    h = jnp.dot(jnp.maximum(y, 0.0), p["f5_w"].T, precision=prec) + p["f5_b"]
    h = jnp.dot(jnp.maximum(h, 0.0), p["f6_w"].T, precision=prec) + p["f6_b"]
    return jnp.dot(h, p["f7_w"].T, precision=prec) + p["f7_b"]


if __name__ == "__main__":
    key = jax.random.PRNGKey(0)
    kx, kparam = jax.random.split(key)
    # LeNet-5 needs 32x32 input so flatten yields 16*5*5 = 400 features.
    x = jax.random.normal(kx, (2, 1, 32, 32), jnp.float32)
    params = init_params(kparam)
    kernel_params = prepare_params(params, batch_tile=x.shape[0])  # one-time

    out = jax.block_until_ready(lenet5_forward(x, kernel_params))
    ref = jax.block_until_ready(lenet5_reference(x, params))

    assert out.shape == (2, 10)
    np.testing.assert_allclose(np.asarray(out), np.asarray(ref),
                               rtol=1e-3, atol=1e-3)
    print("KERNEL_OK")
</pallas_src>

<mosaic_0001>
module attributes {stable_mosaic.version = 11 : i64} {
  func.func @_lenet5_kernel(%arg0: i32, %arg1: memref<56x160xf32, #tpu.memory_space<vmem>>, %arg2: memref<160x168xf32, #tpu.memory_space<vmem>>, %arg3: memref<1x128xf32, #tpu.memory_space<vmem>>, %arg4: memref<64x56xf32, #tpu.memory_space<vmem>>, %arg5: memref<168x256xf32, #tpu.memory_space<vmem>>, %arg6: memref<5x128x160xf32, #tpu.memory_space<vmem>>, %arg7: memref<1x160xf32, #tpu.memory_space<vmem>>, %arg8: memref<160x256xf32, #tpu.memory_space<vmem>>, %arg9: memref<80x24xf32, #tpu.memory_space<vmem>>, %arg10: memref<5x128x120xf32, #tpu.memory_space<vmem>>, %arg11: memref<1x120xf32, #tpu.memory_space<vmem>>, %arg12: memref<120x10xf32, #tpu.memory_space<vmem>>, %arg13: memref<1x10xf32, #tpu.memory_space<vmem>>, %arg14: memref<2x10xf32, #tpu.memory_space<vmem>>) attributes {dimension_semantics = [#tpu.dimension_semantics<parallel>], iteration_bounds = array<i64: 1>, scalar_prefetch = 0 : i64, scratch_operands = 0 : i64, tpu.core_type = #tpu.core_type<tc>, window_params = [{transform_indices = @transform_0, window_bounds = array<i64: 56, 160>}, {pipeline_mode = #tpu.pipeline_mode<synchronous>, transform_indices = @transform_1, window_bounds = array<i64: 160, 168>}, {pipeline_mode = #tpu.pipeline_mode<synchronous>, transform_indices = @transform_2, window_bounds = array<i64: 1, 128>}, {pipeline_mode = #tpu.pipeline_mode<synchronous>, transform_indices = @transform_3, window_bounds = array<i64: 64, 56>}, {pipeline_mode = #tpu.pipeline_mode<synchronous>, transform_indices = @transform_4, window_bounds = array<i64: 168, 256>}, {pipeline_mode = #tpu.pipeline_mode<synchronous>, transform_indices = @transform_5, window_bounds = array<i64: 5, 128, 160>}, {pipeline_mode = #tpu.pipeline_mode<synchronous>, transform_indices = @transform_6, window_bounds = array<i64: 1, 160>}, {pipeline_mode = #tpu.pipeline_mode<synchronous>, transform_indices = @transform_7, window_bounds = array<i64: 160, 256>}, {pipeline_mode = #tpu.pipeline_mode<synchronous>, transform_indices = @transform_8, window_bounds = array<i64: 80, 24>}, {pipeline_mode = #tpu.pipeline_mode<synchronous>, transform_indices = @transform_9, window_bounds = array<i64: 5, 128, 120>}, {pipeline_mode = #tpu.pipeline_mode<synchronous>, transform_indices = @transform_10, window_bounds = array<i64: 1, 120>}, {pipeline_mode = #tpu.pipeline_mode<synchronous>, transform_indices = @transform_11, window_bounds = array<i64: 120, 10>}, {pipeline_mode = #tpu.pipeline_mode<synchronous>, transform_indices = @transform_12, window_bounds = array<i64: 1, 10>}, {transform_indices = @transform_13, window_bounds = array<i64: 2, 10>}]} {
    %c0 = arith.constant 0 : index
    %c0_0 = arith.constant 0 : index
    %0 = vector.load %arg1[%c0, %c0_0] : memref<56x160xf32, #tpu.memory_space<vmem>>, vector<56x160xf32>
    %c0_1 = arith.constant 0 : index
    %c0_2 = arith.constant 0 : index
    %1 = vector.load %arg2[%c0_1, %c0_2] : memref<160x168xf32, #tpu.memory_space<vmem>>, vector<160x168xf32>
    %cst = arith.constant dense<0.000000e+00> : vector<56x168xf32>
    %2 = tpu.matmul %0, %1, %cst {dimension_numbers = #tpu.dot_dimension_numbers<[1], [0], [0], [1], [0, 0, 1, 1], [], []>} : vector<56x160xf32>, vector<160x168xf32>, vector<56x168xf32> -> vector<56x168xf32>
    %c0_3 = arith.constant 0 : index
    %c0_4 = arith.constant 0 : index
    %3 = vector.load %arg4[%c0_3, %c0_4] : memref<64x56xf32, #tpu.memory_space<vmem>>, vector<64x56xf32>
    %cst_5 = arith.constant dense<0.000000e+00> : vector<64x168xf32>
    %4 = tpu.matmul %3, %2, %cst_5 {dimension_numbers = #tpu.dot_dimension_numbers<[1], [0], [0], [1], [0, 0, 1, 1], [], []>} : vector<64x56xf32>, vector<56x168xf32>, vector<64x168xf32> -> vector<64x168xf32>
    %5 = vector.extract_strided_slice %4 {offsets = [0, 0], sizes = [32, 168], strides = [1, 1]} : vector<64x168xf32> to vector<32x168xf32>
    %6 = vector.extract_strided_slice %4 {offsets = [32, 0], sizes = [32, 168], strides = [1, 1]} : vector<64x168xf32> to vector<32x168xf32>
    %7 = arith.maximumf %5, %6 : vector<32x168xf32>
    %c0_6 = arith.constant 0 : index
    %c0_7 = arith.constant 0 : index
    %8 = vector.load %arg5[%c0_6, %c0_7] : memref<168x256xf32, #tpu.memory_space<vmem>>, vector<168x256xf32>
    %cst_8 = arith.constant dense<0.000000e+00> : vector<32x256xf32>
    %9 = tpu.matmul %7, %8, %cst_8 {dimension_numbers = #tpu.dot_dimension_numbers<[1], [0], [0], [1], [0, 0, 1, 1], [], []>} : vector<32x168xf32>, vector<168x256xf32>, vector<32x256xf32> -> vector<32x256xf32>
    %10 = vector.extract_strided_slice %9 {offsets = [0, 0], sizes = [32, 128], strides = [1, 1]} : vector<32x256xf32> to vector<32x128xf32>
    %11 = vector.extract_strided_slice %9 {offsets = [0, 128], sizes = [32, 128], strides = [1, 1]} : vector<32x256xf32> to vector<32x128xf32>
    %12 = arith.maximumf %10, %11 : vector<32x128xf32>
    %c0_9 = arith.constant 0 : index
    %c0_10 = arith.constant 0 : index
    %13 = vector.load %arg3[%c0_9, %c0_10] : memref<1x128xf32, #tpu.memory_space<vmem>>, vector<1x128xf32>
    %14 = vector.broadcast %13 : vector<1x128xf32> to vector<32x128xf32>
    %15 = arith.addf %12, %14 : vector<32x128xf32>
    %16 = vector.extract_strided_slice %15 {offsets = [0, 0], sizes = [24, 128], strides = [1, 1]} : vector<32x128xf32> to vector<24x128xf32>
    %c0_11 = arith.constant 0 : index
    %c0_12 = arith.constant 0 : index
    %c0_13 = arith.constant 0 : index
    %17 = vector.load %arg6[%c0_11, %c0_12, %c0_13] : memref<5x128x160xf32, #tpu.memory_space<vmem>>, vector<1x128x160xf32>
    %18 = vector.shape_cast %17 : vector<1x128x160xf32> to vector<128x160xf32>
    %cst_14 = arith.constant dense<0.000000e+00> : vector<24x160xf32>
    %19 = tpu.matmul %16, %18, %cst_14 {dimension_numbers = #tpu.dot_dimension_numbers<[1], [0], [0], [1], [0, 0, 1, 1], [], []>} : vector<24x128xf32>, vector<128x160xf32>, vector<24x160xf32> -> vector<24x160xf32>
    %20 = vector.extract_strided_slice %15 {offsets = [1, 0], sizes = [24, 128], strides = [1, 1]} : vector<32x128xf32> to vector<24x128xf32>
    %c1 = arith.constant 1 : index
    %c0_15 = arith.constant 0 : index
    %c0_16 = arith.constant 0 : index
    %21 = vector.load %arg6[%c1, %c0_15, %c0_16] : memref<5x128x160xf32, #tpu.memory_space<vmem>>, vector<1x128x160xf32>
    %22 = vector.shape_cast %21 : vector<1x128x160xf32> to vector<128x160xf32>
    %cst_17 = arith.constant dense<0.000000e+00> : vector<24x160xf32>
    %23 = tpu.matmul %20, %22, %cst_17 {dimension_numbers = #tpu.dot_dimension_numbers<[1], [0], [0], [1], [0, 0, 1, 1], [], []>} : vector<24x128xf32>, vector<128x160xf32>, vector<24x160xf32> -> vector<24x160xf32>
    %24 = arith.addf %19, %23 : vector<24x160xf32>
    %25 = vector.extract_strided_slice %15 {offsets = [2, 0], sizes = [24, 128], strides = [1, 1]} : vector<32x128xf32> to vector<24x128xf32>
    %c2 = arith.constant 2 : index
    %c0_18 = arith.constant 0 : index
    %c0_19 = arith.constant 0 : index
    %26 = vector.load %arg6[%c2, %c0_18, %c0_19] : memref<5x128x160xf32, #tpu.memory_space<vmem>>, vector<1x128x160xf32>
    %27 = vector.shape_cast %26 : vector<1x128x160xf32> to vector<128x160xf32>
    %cst_20 = arith.constant dense<0.000000e+00> : vector<24x160xf32>
    %28 = tpu.matmul %25, %27, %cst_20 {dimension_numbers = #tpu.dot_dimension_numbers<[1], [0], [0], [1], [0, 0, 1, 1], [], []>} : vector<24x128xf32>, vector<128x160xf32>, vector<24x160xf32> -> vector<24x160xf32>
    %29 = arith.addf %24, %28 : vector<24x160xf32>
    %30 = vector.extract_strided_slice %15 {offsets = [3, 0], sizes = [24, 128], strides = [1, 1]} : vector<32x128xf32> to vector<24x128xf32>
    %c3 = arith.constant 3 : index
    %c0_21 = arith.constant 0 : index
    %c0_22 = arith.constant 0 : index
    %31 = vector.load %arg6[%c3, %c0_21, %c0_22] : memref<5x128x160xf32, #tpu.memory_space<vmem>>, vector<1x128x160xf32>
    %32 = vector.shape_cast %31 : vector<1x128x160xf32> to vector<128x160xf32>
    %cst_23 = arith.constant dense<0.000000e+00> : vector<24x160xf32>
    %33 = tpu.matmul %30, %32, %cst_23 {dimension_numbers = #tpu.dot_dimension_numbers<[1], [0], [0], [1], [0, 0, 1, 1], [], []>} : vector<24x128xf32>, vector<128x160xf32>, vector<24x160xf32> -> vector<24x160xf32>
    %34 = arith.addf %29, %33 : vector<24x160xf32>
    %35 = vector.extract_strided_slice %15 {offsets = [4, 0], sizes = [24, 128], strides = [1, 1]} : vector<32x128xf32> to vector<24x128xf32>
    %c4 = arith.constant 4 : index
    %c0_24 = arith.constant 0 : index
    %c0_25 = arith.constant 0 : index
    %36 = vector.load %arg6[%c4, %c0_24, %c0_25] : memref<5x128x160xf32, #tpu.memory_space<vmem>>, vector<1x128x160xf32>
    %37 = vector.shape_cast %36 : vector<1x128x160xf32> to vector<128x160xf32>
    %cst_26 = arith.constant dense<0.000000e+00> : vector<24x160xf32>
    %38 = tpu.matmul %35, %37, %cst_26 {dimension_numbers = #tpu.dot_dimension_numbers<[1], [0], [0], [1], [0, 0, 1, 1], [], []>} : vector<24x128xf32>, vector<128x160xf32>, vector<24x160xf32> -> vector<24x160xf32>
    %39 = arith.addf %34, %38 : vector<24x160xf32>
    %c0_27 = arith.constant 0 : index
    %c0_28 = arith.constant 0 : index
    %40 = vector.load %arg7[%c0_27, %c0_28] : memref<1x160xf32, #tpu.memory_space<vmem>>, vector<1x160xf32>
    %41 = vector.broadcast %40 : vector<1x160xf32> to vector<24x160xf32>
    %42 = arith.addf %39, %41 : vector<24x160xf32>
    %c0_29 = arith.constant 0 : index
    %c0_30 = arith.constant 0 : index
    %43 = vector.load %arg8[%c0_29, %c0_30] : memref<160x256xf32, #tpu.memory_space<vmem>>, vector<160x256xf32>
    %cst_31 = arith.constant dense<0.000000e+00> : vector<24x256xf32>
    %44 = tpu.matmul %42, %43, %cst_31 {dimension_numbers = #tpu.dot_dimension_numbers<[1], [0], [0], [1], [0, 0, 1, 1], [], []>} : vector<24x160xf32>, vector<160x256xf32>, vector<24x256xf32> -> vector<24x256xf32>
    %45 = vector.extract_strided_slice %44 {offsets = [0, 0], sizes = [24, 128], strides = [1, 1]} : vector<24x256xf32> to vector<24x128xf32>
    %46 = vector.extract_strided_slice %44 {offsets = [0, 128], sizes = [24, 128], strides = [1, 1]} : vector<24x256xf32> to vector<24x128xf32>
    %47 = arith.maximumf %45, %46 : vector<24x128xf32>
    %c0_32 = arith.constant 0 : index
    %c0_33 = arith.constant 0 : index
    %48 = vector.load %arg9[%c0_32, %c0_33] : memref<80x24xf32, #tpu.memory_space<vmem>>, vector<80x24xf32>
    %cst_34 = arith.constant dense<0.000000e+00> : vector<80x128xf32>
    %49 = tpu.matmul %48, %47, %cst_34 {dimension_numbers = #tpu.dot_dimension_numbers<[1], [0], [0], [1], [0, 0, 1, 1], [], []>} : vector<80x24xf32>, vector<24x128xf32>, vector<80x128xf32> -> vector<80x128xf32>
    %50 = vector.extract_strided_slice %49 {offsets = [0, 0], sizes = [40, 128], strides = [1, 1]} : vector<80x128xf32> to vector<40x128xf32>
    %51 = vector.extract_strided_slice %49 {offsets = [40, 0], sizes = [40, 128], strides = [1, 1]} : vector<80x128xf32> to vector<40x128xf32>
    %52 = arith.maximumf %50, %51 : vector<40x128xf32>
    %cst_35 = arith.constant 0.000000e+00 : f32
    %53 = vector.broadcast %cst_35 : f32 to vector<40x128xf32>
    %54 = arith.maximumf %52, %53 : vector<40x128xf32>
    %55 = vector.extract_strided_slice %54 {offsets = [0, 0], sizes = [8, 128], strides = [1, 1]} : vector<40x128xf32> to vector<8x128xf32>
    %c0_36 = arith.constant 0 : index
    %c0_37 = arith.constant 0 : index
    %c0_38 = arith.constant 0 : index
    %56 = vector.load %arg10[%c0_36, %c0_37, %c0_38] : memref<5x128x120xf32, #tpu.memory_space<vmem>>, vector<1x128x120xf32>
    %57 = vector.shape_cast %56 : vector<1x128x120xf32> to vector<128x120xf32>
    %cst_39 = arith.constant dense<0.000000e+00> : vector<8x120xf32>
    %58 = tpu.matmul %55, %57, %cst_39 {dimension_numbers = #tpu.dot_dimension_numbers<[1], [0], [0], [1], [0, 0, 1, 1], [], []>} : vector<8x128xf32>, vector<128x120xf32>, vector<8x120xf32> -> vector<8x120xf32>
    %59 = vector.extract_strided_slice %54 {offsets = [8, 0], sizes = [8, 128], strides = [1, 1]} : vector<40x128xf32> to vector<8x128xf32>
    %c1_40 = arith.constant 1 : index
    %c0_41 = arith.constant 0 : index
    %c0_42 = arith.constant 0 : index
    %60 = vector.load %arg10[%c1_40, %c0_41, %c0_42] : memref<5x128x120xf32, #tpu.memory_space<vmem>>, vector<1x128x120xf32>
    %61 = vector.shape_cast %60 : vector<1x128x120xf32> to vector<128x120xf32>
    %cst_43 = arith.constant dense<0.000000e+00> : vector<8x120xf32>
    %62 = tpu.matmul %59, %61, %cst_43 {dimension_numbers = #tpu.dot_dimension_numbers<[1], [0], [0], [1], [0, 0, 1, 1], [], []>} : vector<8x128xf32>, vector<128x120xf32>, vector<8x120xf32> -> vector<8x120xf32>
    %63 = arith.addf %58, %62 : vector<8x120xf32>
    %64 = vector.extract_strided_slice %54 {offsets = [16, 0], sizes = [8, 128], strides = [1, 1]} : vector<40x128xf32> to vector<8x128xf32>
    %c2_44 = arith.constant 2 : index
    %c0_45 = arith.constant 0 : index
    %c0_46 = arith.constant 0 : index
    %65 = vector.load %arg10[%c2_44, %c0_45, %c0_46] : memref<5x128x120xf32, #tpu.memory_space<vmem>>, vector<1x128x120xf32>
    %66 = vector.shape_cast %65 : vector<1x128x120xf32> to vector<128x120xf32>
    %cst_47 = arith.constant dense<0.000000e+00> : vector<8x120xf32>
    %67 = tpu.matmul %64, %66, %cst_47 {dimension_numbers = #tpu.dot_dimension_numbers<[1], [0], [0], [1], [0, 0, 1, 1], [], []>} : vector<8x128xf32>, vector<128x120xf32>, vector<8x120xf32> -> vector<8x120xf32>
    %68 = arith.addf %63, %67 : vector<8x120xf32>
    %69 = vector.extract_strided_slice %54 {offsets = [24, 0], sizes = [8, 128], strides = [1, 1]} : vector<40x128xf32> to vector<8x128xf32>
    %c3_48 = arith.constant 3 : index
    %c0_49 = arith.constant 0 : index
    %c0_50 = arith.constant 0 : index
    %70 = vector.load %arg10[%c3_48, %c0_49, %c0_50] : memref<5x128x120xf32, #tpu.memory_space<vmem>>, vector<1x128x120xf32>
    %71 = vector.shape_cast %70 : vector<1x128x120xf32> to vector<128x120xf32>
    %cst_51 = arith.constant dense<0.000000e+00> : vector<8x120xf32>
    %72 = tpu.matmul %69, %71, %cst_51 {dimension_numbers = #tpu.dot_dimension_numbers<[1], [0], [0], [1], [0, 0, 1, 1], [], []>} : vector<8x128xf32>, vector<128x120xf32>, vector<8x120xf32> -> vector<8x120xf32>
    %73 = arith.addf %68, %72 : vector<8x120xf32>
    %74 = vector.extract_strided_slice %54 {offsets = [32, 0], sizes = [8, 128], strides = [1, 1]} : vector<40x128xf32> to vector<8x128xf32>
    %c4_52 = arith.constant 4 : index
    %c0_53 = arith.constant 0 : index
    %c0_54 = arith.constant 0 : index
    %75 = vector.load %arg10[%c4_52, %c0_53, %c0_54] : memref<5x128x120xf32, #tpu.memory_space<vmem>>, vector<1x128x120xf32>
    %76 = vector.shape_cast %75 : vector<1x128x120xf32> to vector<128x120xf32>
    %cst_55 = arith.constant dense<0.000000e+00> : vector<8x120xf32>
    %77 = tpu.matmul %74, %76, %cst_55 {dimension_numbers = #tpu.dot_dimension_numbers<[1], [0], [0], [1], [0, 0, 1, 1], [], []>} : vector<8x128xf32>, vector<128x120xf32>, vector<8x120xf32> -> vector<8x120xf32>
    %78 = arith.addf %73, %77 : vector<8x120xf32>
    %c0_56 = arith.constant 0 : index
    %c0_57 = arith.constant 0 : index
    %79 = vector.load %arg11[%c0_56, %c0_57] : memref<1x120xf32, #tpu.memory_space<vmem>>, vector<1x120xf32>
    %80 = vector.broadcast %79 : vector<1x120xf32> to vector<8x120xf32>
    %81 = arith.addf %78, %80 : vector<8x120xf32>
    %cst_58 = arith.constant 0.000000e+00 : f32
    %82 = vector.broadcast %cst_58 : f32 to vector<8x120xf32>
    %83 = arith.maximumf %81, %82 : vector<8x120xf32>
    %c0_59 = arith.constant 0 : index
    %c0_60 = arith.constant 0 : index
    %84 = vector.load %arg12[%c0_59, %c0_60] : memref<120x10xf32, #tpu.memory_space<vmem>>, vector<120x10xf32>
    %cst_61 = arith.constant dense<0.000000e+00> : vector<8x10xf32>
    %85 = tpu.matmul %83, %84, %cst_61 {dimension_numbers = #tpu.dot_dimension_numbers<[1], [0], [0], [1], [0, 0, 1, 1], [], []>} : vector<8x120xf32>, vector<120x10xf32>, vector<8x10xf32> -> vector<8x10xf32>
    %c0_62 = arith.constant 0 : index
    %c0_63 = arith.constant 0 : index
    %86 = vector.load %arg13[%c0_62, %c0_63] : memref<1x10xf32, #tpu.memory_space<vmem>>, vector<1x10xf32>
    %87 = vector.broadcast %86 : vector<1x10xf32> to vector<8x10xf32>
    %88 = arith.addf %85, %87 : vector<8x10xf32>
    %89 = vector.extract_strided_slice %88 {offsets = [0, 0], sizes = [2, 10], strides = [1, 1]} : vector<8x10xf32> to vector<2x10xf32>
    %c0_64 = arith.constant 0 : index
    %c0_65 = arith.constant 0 : index
    %90 = vector.load %arg14[%c0_64, %c0_65] : memref<2x10xf32, #tpu.memory_space<vmem>>, vector<2x10xf32>
    tpu.vector_store %arg14[%c0_64, %c0_65], %89 {strides = array<i32>} : memref<2x10xf32, #tpu.memory_space<vmem>>, vector<2x10xf32>,
    return
  }
  func.func @transform_0(%arg0: i32) -> (i32, i32) {
    %c0_i32 = arith.constant 0 : i32
    %c0_i32_0 = arith.constant 0 : i32
    return %arg0, %c0_i32 : i32, i32
  }
  func.func @transform_1(%arg0: i32) -> (i32, i32) {
    %c0_i32 = arith.constant 0 : i32
    %c0_i32_0 = arith.constant 0 : i32
    %c0_i32_1 = arith.constant 0 : i32
    return %c0_i32, %c0_i32_0 : i32, i32
  }
  func.func @transform_2(%arg0: i32) -> (i32, i32) {
    %c0_i32 = arith.constant 0 : i32
    %c0_i32_0 = arith.constant 0 : i32
    %c0_i32_1 = arith.constant 0 : i32
    return %c0_i32, %c0_i32_0 : i32, i32
  }
  func.func @transform_3(%arg0: i32) -> (i32, i32) {
    %c0_i32 = arith.constant 0 : i32
    %c0_i32_0 = arith.constant 0 : i32
    %c0_i32_1 = arith.constant 0 : i32
    return %c0_i32, %c0_i32_0 : i32, i32
  }
  func.func @transform_4(%arg0: i32) -> (i32, i32) {
    %c0_i32 = arith.constant 0 : i32
    %c0_i32_0 = arith.constant 0 : i32
    %c0_i32_1 = arith.constant 0 : i32
    return %c0_i32, %c0_i32_0 : i32, i32
  }
  func.func @transform_5(%arg0: i32) -> (i32, i32, i32) {
    %c0_i32 = arith.constant 0 : i32
    %c0_i32_0 = arith.constant 0 : i32
    %c0_i32_1 = arith.constant 0 : i32
    %c0_i32_2 = arith.constant 0 : i32
    return %c0_i32, %c0_i32_0, %c0_i32_1 : i32, i32, i32
  }
  func.func @transform_6(%arg0: i32) -> (i32, i32) {
    %c0_i32 = arith.constant 0 : i32
    %c0_i32_0 = arith.constant 0 : i32
    %c0_i32_1 = arith.constant 0 : i32
    return %c0_i32, %c0_i32_0 : i32, i32
  }
  func.func @transform_7(%arg0: i32) -> (i32, i32) {
    %c0_i32 = arith.constant 0 : i32
    %c0_i32_0 = arith.constant 0 : i32
    %c0_i32_1 = arith.constant 0 : i32
    return %c0_i32, %c0_i32_0 : i32, i32
  }
  func.func @transform_8(%arg0: i32) -> (i32, i32) {
    %c0_i32 = arith.constant 0 : i32
    %c0_i32_0 = arith.constant 0 : i32
    %c0_i32_1 = arith.constant 0 : i32
    return %c0_i32, %c0_i32_0 : i32, i32
  }
  func.func @transform_9(%arg0: i32) -> (i32, i32, i32) {
    %c0_i32 = arith.constant 0 : i32
    %c0_i32_0 = arith.constant 0 : i32
    %c0_i32_1 = arith.constant 0 : i32
    %c0_i32_2 = arith.constant 0 : i32
    return %c0_i32, %c0_i32_0, %c0_i32_1 : i32, i32, i32
  }
  func.func @transform_10(%arg0: i32) -> (i32, i32) {
    %c0_i32 = arith.constant 0 : i32
    %c0_i32_0 = arith.constant 0 : i32
    %c0_i32_1 = arith.constant 0 : i32
    return %c0_i32, %c0_i32_0 : i32, i32
  }
  func.func @transform_11(%arg0: i32) -> (i32, i32) {
    %c0_i32 = arith.constant 0 : i32
    %c0_i32_0 = arith.constant 0 : i32
    %c0_i32_1 = arith.constant 0 : i32
    return %c0_i32, %c0_i32_0 : i32, i32
  }
  func.func @transform_12(%arg0: i32) -> (i32, i32) {
    %c0_i32 = arith.constant 0 : i32
    %c0_i32_0 = arith.constant 0 : i32
    %c0_i32_1 = arith.constant 0 : i32
    return %c0_i32, %c0_i32_0 : i32, i32
  }
  func.func @transform_13(%arg0: i32) -> (i32, i32) {
    %c0_i32 = arith.constant 0 : i32
    %c0_i32_0 = arith.constant 0 : i32
    return %arg0, %c0_i32 : i32, i32
  }
}

</mosaic_0001>

<llo_original>
// kernel: lenet5_forward.1
$region0: #{lenet5_forward.1}
  #allocation0 [shape = 'u32[]', space=smem, size = 0x4, offset = 0x4, fixed_abs, tag = 'smem constant byte address 0x4 - core index']
  #allocation1 [shape = 'u32[144,128]{1,0:T(1,128)}', space=vmem, size = 0x12000, scoped, tag = 'internal scratch']
  %s0 = inlined_call_operand.vmem [shape: f32[56,160], index: 0, kind: input, shape index: {}]
  %s1 = inlined_call_operand.vmem [shape: f32[160,168], index: 1, kind: input, shape index: {}]
  %s2 = inlined_call_operand.vmem [shape: f32[1,128], index: 2, kind: input, shape index: {}]
  %s3 = inlined_call_operand.vmem [shape: f32[64,56], index: 3, kind: input, shape index: {}]
  %s4 = inlined_call_operand.vmem [shape: f32[168,256], index: 4, kind: input, shape index: {}]
  %s5 = inlined_call_operand.vmem [shape: f32[5,128,160], index: 5, kind: input, shape index: {}]
  %s6 = inlined_call_operand.vmem [shape: f32[1,160], index: 6, kind: input, shape index: {}]
  %s7 = inlined_call_operand.vmem [shape: f32[160,256], index: 7, kind: input, shape index: {}]
  %s8 = inlined_call_operand.vmem [shape: f32[80,24], index: 8, kind: input, shape index: {}]
  %s9 = inlined_call_operand.vmem [shape: f32[5,128,120], index: 9, kind: input, shape index: {}]
  %s10 = inlined_call_operand.vmem [shape: f32[1,120], index: 10, kind: input, shape index: {}]
  %s11 = inlined_call_operand.vmem [shape: f32[120,10], index: 11, kind: input, shape index: {}]
  %s12 = inlined_call_operand.vmem [shape: f32[1,10], index: 12, kind: input, shape index: {}]
  %s13 = inlined_call_operand.hbm [shape: f32[2,10], index: 13, kind: output, shape index: {}]
  %s14 = sld [smem:[#allocation0]]
  $region62: #{lenet5_forward.1} parent=0
    _
  %s16 = ssub.s32 1, %s14
  %s17 = scalar_select 0, %s16, %s14
  $region1: #{lenet5_forward.1} parent=0
    #allocation2 [shape = 'u8[1024]{0}', space=vmem, size = 0x400, scoped, tag = 'output window, operand 0, single buffered']
    #allocation3 [shape = 's32[1]{0}', space=sflag, size = 0x4, scoped, tag = 'scoped memory for lenet5_forward.1']
    %18 = vsyncpa [#allocation3], 0
    // Predicated region
    $region2: #{lenet5_forward.1} parent=1 // pred_check
      _
    $region3: #{lenet5_forward.1} parent=1 // pred_check_branch
      %20 = sbr.rel (0) target = $region5
    $region4: #{lenet5_forward.1} parent=1 // pred_region
      _
    $region5: #{lenet5_forward.1} parent=1 // pred_fallthru
      _
    // Predicated region
    $region6: #{lenet5_forward.1} parent=1 // pred_check
      _
    $region7: #{lenet5_forward.1} parent=1 // pred_check_branch
      %22 = sbr.rel (0) target = $region9
    $region8: #{lenet5_forward.1} parent=1 // pred_region
      _
    $region9: #{lenet5_forward.1} parent=1 // pred_fallthru
      _
    // Predicated region
    $region10: #{lenet5_forward.1} parent=1 // pred_check
      _
    $region11: #{lenet5_forward.1} parent=1 // pred_check_branch
      %24 = sbr.rel (0) target = $region13
    $region12: #{lenet5_forward.1} parent=1 // pred_region
      _
    $region13: #{lenet5_forward.1} parent=1 // pred_fallthru
      _
    // Predicated region
    $region14: #{lenet5_forward.1} parent=1 // pred_check
      _
    $region15: #{lenet5_forward.1} parent=1 // pred_check_branch
      %26 = sbr.rel (0) target = $region17
    $region16: #{lenet5_forward.1} parent=1 // pred_region
      _
    $region17: #{lenet5_forward.1} parent=1 // pred_fallthru
      _
    // Predicated region
    $region18: #{lenet5_forward.1} parent=1 // pred_check
      _
    $region19: #{lenet5_forward.1} parent=1 // pred_check_branch
      %28 = sbr.rel (0) target = $region21
    $region20: #{lenet5_forward.1} parent=1 // pred_region
      _
    $region21: #{lenet5_forward.1} parent=1 // pred_fallthru
      _
    // Predicated region
    $region22: #{lenet5_forward.1} parent=1 // pred_check
      _
    $region23: #{lenet5_forward.1} parent=1 // pred_check_branch
      %30 = sbr.rel (0) target = $region25
    $region24: #{lenet5_forward.1} parent=1 // pred_region
      _
    $region25: #{lenet5_forward.1} parent=1 // pred_fallthru
      _
    // Predicated region
    $region26: #{lenet5_forward.1} parent=1 // pred_check
      _
    $region27: #{lenet5_forward.1} parent=1 // pred_check_branch
      %32 = sbr.rel (0) target = $region29
    $region28: #{lenet5_forward.1} parent=1 // pred_region
      _
    $region29: #{lenet5_forward.1} parent=1 // pred_fallthru
      _
    // Predicated region
    $region30: #{lenet5_forward.1} parent=1 // pred_check
      _
    $region31: #{lenet5_forward.1} parent=1 // pred_check_branch
      %34 = sbr.rel (0) target = $region33
    $region32: #{lenet5_forward.1} parent=1 // pred_region
      _
    $region33: #{lenet5_forward.1} parent=1 // pred_fallthru
      _
    // Predicated region
    $region34: #{lenet5_forward.1} parent=1 // pred_check
      _
    $region35: #{lenet5_forward.1} parent=1 // pred_check_branch
      %36 = sbr.rel (0) target = $region37
    $region36: #{lenet5_forward.1} parent=1 // pred_region
      _
    $region37: #{lenet5_forward.1} parent=1 // pred_fallthru
      _
    // Predicated region
    $region38: #{lenet5_forward.1} parent=1 // pred_check
      _
    $region39: #{lenet5_forward.1} parent=1 // pred_check_branch
      %38 = sbr.rel (0) target = $region41
    $region40: #{lenet5_forward.1} parent=1 // pred_region
      _
    $region41: #{lenet5_forward.1} parent=1 // pred_fallthru
      _
    // Predicated region
    $region42: #{lenet5_forward.1} parent=1 // pred_check
      _
    $region43: #{lenet5_forward.1} parent=1 // pred_check_branch
      %40 = sbr.rel (0) target = $region45
    $region44: #{lenet5_forward.1} parent=1 // pred_region
      _
    $region45: #{lenet5_forward.1} parent=1 // pred_fallthru
      _
    // Predicated region
    $region46: #{lenet5_forward.1} parent=1 // pred_check
      _
    $region47: #{lenet5_forward.1} parent=1 // pred_check_branch
      %42 = sbr.rel (0) target = $region49
    $region48: #{lenet5_forward.1} parent=1 // pred_region
      _
    $region49: #{lenet5_forward.1} parent=1 // pred_fallthru
      _
    // Predicated region
    $region50: #{lenet5_forward.1} parent=1 // pred_check
      _
    $region51: #{lenet5_forward.1} parent=1 // pred_check_branch
      %44 = sbr.rel (0) target = $region53
    $region52: #{lenet5_forward.1} parent=1 // pred_region
      _
    $region53: #{lenet5_forward.1} parent=1 // pred_fallthru
      _
    %v45 = vld [vmem:[%s0] sm:$0xff]
    %v46 = vld [vmem:[%s0 + $0x8] sm:$0xff]
    %v47 = vld [vmem:[%s0 + $0x10] sm:$0xff]
    %v48 = vld [vmem:[%s0 + $0x18] sm:$0xff]
    %v49 = vld [vmem:[%s0 + $0x20] sm:$0xff]
    %v50 = vld [vmem:[%s0 + $0x28] sm:$0xff]
    %v51 = vld [vmem:[%s0 + $0x30] sm:$0xff]
    %v52 = vld [vmem:[%s0 + $0x38] sm:$0xff]
    %v53 = vld [vmem:[%s0 + $0x40] sm:$0xff]
    %v54 = vld [vmem:[%s0 + $0x48] sm:$0xff]
    %v55 = vld [vmem:[%s0 + $0x50] sm:$0xff]
    %v56 = vld [vmem:[%s0 + $0x58] sm:$0xff]
    %v57 = vld [vmem:[%s0 + $0x60] sm:$0xff]
    %v58 = vld [vmem:[%s0 + $0x68] sm:$0xff]
    %v59 = vld [vmem:[%s1] sm:$0xff]
    %v60 = vld [vmem:[%s1 + $0x8] sm:$0xff]
    %v61 = vld [vmem:[%s1 + $0x10] sm:$0xff]
    %v62 = vld [vmem:[%s1 + $0x18] sm:$0xff]
    %v63 = vld [vmem:[%s1 + $0x20] sm:$0xff]
    %v64 = vld [vmem:[%s1 + $0x28] sm:$0xff]
    %v65 = vld [vmem:[%s1 + $0x30] sm:$0xff]
    %v66 = vld [vmem:[%s1 + $0x38] sm:$0xff]
    %v67 = vld [vmem:[%s1 + $0x40] sm:$0xff]
    %v68 = vld [vmem:[%s1 + $0x48] sm:$0xff]
    %v69 = vld [vmem:[%s1 + $0x50] sm:$0xff]
    %v70 = vld [vmem:[%s1 + $0x58] sm:$0xff]
    %v71 = vld [vmem:[%s1 + $0x60] sm:$0xff]
    %v72 = vld [vmem:[%s1 + $0x68] sm:$0xff]
    %v73 = vld [vmem:[%s1 + $0x70] sm:$0xff]
    %v74 = vld [vmem:[%s1 + $0x78] sm:$0xff]
    %v75 = vld [vmem:[%s1 + $0x80] sm:$0xff]
    %v76 = vld [vmem:[%s1 + $0x88] sm:$0xff]
    %v77 = vld [vmem:[%s1 + $0x90] sm:$0xff]
    %v78 = vld [vmem:[%s1 + $0x98] sm:$0xff]
    %v79 = vld [vmem:[%s1 + $0xa0] sm:$0xff]
    %v80 = vld [vmem:[%s1 + $0xa8] sm:$0xff]
    %v81 = vld [vmem:[%s1 + $0xb0] sm:$0xff]
    %v82 = vld [vmem:[%s1 + $0xb8] sm:$0xff]
    %v83 = vld [vmem:[%s1 + $0xc0] sm:$0xff]
    %v84 = vld [vmem:[%s1 + $0xc8] sm:$0xff]
    %v85 = vld [vmem:[%s1 + $0xd0] sm:$0xff]
    %v86 = vld [vmem:[%s1 + $0xd8] sm:$0xff]
    %v87 = vld [vmem:[%s1 + $0xe0] sm:$0xff]
    %v88 = vld [vmem:[%s1 + $0xe8] sm:$0xff]
    %v89 = vld [vmem:[%s1 + $0xf0] sm:$0xff]
    %v90 = vld [vmem:[%s1 + $0xf8] sm:$0xff]
    %v91 = vld [vmem:[%s1 + $0x100] sm:$0xff]
    %v92 = vld [vmem:[%s1 + $0x108] sm:$0xff]
    %v93 = vld [vmem:[%s1 + $0x110] sm:$0xff]
    %v94 = vld [vmem:[%s1 + $0x118] sm:$0xff]
    %v95 = vld [vmem:[%s1 + $0x120] sm:$0xff]
    %v96 = vld [vmem:[%s1 + $0x128] sm:$0xff]
    %v97 = vld [vmem:[%s1 + $0x130] sm:$0xff]
    %v98 = vld [vmem:[%s1 + $0x138] sm:$0xff]
    %vm99 = vcmask 261120
    %v101 = vsel %vm99, %v46, 0
    %v104 = vsel %vm99, %v48, 0
    %v107 = vsel %vm99, %v50, 0
    %v110 = vsel %vm99, %v52, 0
    %v113 = vsel %vm99, %v54, 0
    %v116 = vsel %vm99, %v56, 0
    %v119 = vsel %vm99, %v58, 0
    %121 = vmatprep.subr.mxu0 %v60
    %122 = vmatpush1.msra.mxu0 %v59
    %123 = vmatprep.subr.mxu0 %v62
    %124 = vmatpush1.msra.mxu0 %v61
    %125 = vmatprep.subr.mxu0 %v64
    %126 = vmatpush1.msra.mxu0 %v63
    %127 = vmatprep.subr.mxu0 %v66
    %128 = vmatpush1.msra.mxu0 %v65
    %129 = vmatprep.subr.mxu0 %v68
    %130 = vmatpush1.msra.mxu0 %v67
    %131 = vmatprep.subr.mxu0 %v70
    %132 = vmatpush1.msra.mxu0 %v69
    %133 = vmatprep.subr.mxu0 %v72
    %134 = vmatpush1.msra.mxu0 %v71
    %135 = vmatprep.subr.mxu0 %v74
    %136 = vmatpush1.msra.mxu0 %v73
    %137 = vmatprep.subr.mxu0 %v76
    %138 = vmatpush1.msra.mxu0 %v75
    %139 = vmatprep.subr.mxu0 %v78
    %140 = vmatpush1.msra.mxu0 %v77
    %141 = vmatprep.subr.mxu0 %v80
    %142 = vmatpush1.msra.mxu0 %v79
    %143 = vmatprep.subr.mxu0 %v82
    %144 = vmatpush1.msra.mxu0 %v81
    %145 = vmatprep.subr.mxu0 %v84
    %146 = vmatpush1.msra.mxu0 %v83
    %147 = vmatprep.subr.mxu0 %v86
    %148 = vmatpush1.msra.mxu0 %v85
    %149 = vmatprep.subr.mxu0 %v88
    %150 = vmatpush1.msra.mxu0 %v87
    %151 = vmatprep.subr.mxu0 %v90
    %152 = vmatpush1.msra.mxu0 %v89
    %153 = vmatprep.subr.mxu0 %v92
    %154 = vmatpush1.msra.mxu0 %v91
    %155 = vmatprep.subr.mxu0 %v94
    %156 = vmatpush1.msra.mxu0 %v93
    %157 = vmatprep.subr.mxu0 %v96
    %158 = vmatpush1.msra.mxu0 %v95
    %159 = vmatprep.subr.mxu0 %v98
    %160 = vmatpush1.msra.mxu0 %v97
    %161 = vmatprep.subr.mxu0 0.0
    %162 = vmatpush1.msra.mxu0 0.0
    %163 = vmatprep.subr.mxu0 0.0
    %164 = vmatpush1.msra.mxu0 0.0
    %165 = vmatprep.subr.mxu0 0.0
    %166 = vmatpush1.msra.mxu0 0.0
    %167 = vmatprep.subr.mxu0 0.0
    %168 = vmatpush1.msra.mxu0 0.0
    %169 = vmatprep.subr.mxu0 0.0
    %170 = vmatpush1.msra.mxu0 0.0
    %171 = vmatprep.subr.mxu0 0.0
    %172 = vmatpush1.msra.mxu0 0.0
    %173 = vmatprep.subr.mxu0 0.0
    %174 = vmatpush1.msra.mxu0 0.0
    %175 = vmatprep.subr.mxu0 0.0
    %176 = vmatpush1.msra.mxu0 0.0
    %177 = vmatprep.subr.mxu0 0.0
    %178 = vmatpush1.msra.mxu0 0.0
    %179 = vmatprep.subr.mxu0 0.0
    %180 = vmatpush1.msra.mxu0 0.0
    %181 = vmatprep.subr.mxu0 0.0
    %182 = vmatpush1.msra.mxu0 0.0
    %183 = vmatprep.subr.mxu0 0.0
    %184 = vmatpush1.msra.mxu0 0.0
    %185 = vmatprep.mubr.f32.mxu0 %v101
    %186 = vmatmul.mubr.f32.gmra.mrb[0].mxu0 %v45
    %v187 = vpop.f32.mrb[0].mxu0
    %v188 = vadd.f32 0.0, %v187
    %v189 = vpop.f32.mrb[0].mxu0
    %v190 = vadd.f32 0.0, %v189
    %191 = vmatprep.mubr.f32.mxu0 %v104
    %192 = vmatmul.mubr.f32.gmra.mrb[0].mxu0 %v47
    %v193 = vpop.f32.mrb[0].mxu0
    %v194 = vadd.f32 0.0, %v193
    %v195 = vpop.f32.mrb[0].mxu0
    %v196 = vadd.f32 0.0, %v195
    %197 = vmatprep.mubr.f32.mxu0 %v107
    %198 = vmatmul.mubr.f32.gmra.mrb[0].mxu0 %v49
    %v199 = vpop.f32.mrb[0].mxu0
    %v200 = vadd.f32 0.0, %v199
    %v201 = vpop.f32.mrb[0].mxu0
    %v202 = vadd.f32 0.0, %v201
    %203 = vmatprep.mubr.f32.mxu0 %v110
    %204 = vmatmul.mubr.f32.gmra.mrb[0].mxu0 %v51
    %v205 = vpop.f32.mrb[0].mxu0
    %v206 = vadd.f32 0.0, %v205
    %v207 = vpop.f32.mrb[0].mxu0
    %v208 = vadd.f32 0.0, %v207
    %209 = vmatprep.mubr.f32.mxu0 %v113
    %210 = vmatmul.mubr.f32.gmra.mrb[0].mxu0 %v53
    %v211 = vpop.f32.mrb[0].mxu0
    %v212 = vadd.f32 0.0, %v211
    %v213 = vpop.f32.mrb[0].mxu0
    %v214 = vadd.f32 0.0, %v213
    %215 = vmatprep.mubr.f32.mxu0 %v116
    %216 = vmatmul.mubr.f32.gmra.mrb[0].mxu0 %v55
    %v217 = vpop.f32.mrb[0].mxu0
    %v218 = vadd.f32 0.0, %v217
    %v219 = vpop.f32.mrb[0].mxu0
    %v220 = vadd.f32 0.0, %v219
    %221 = vmatprep.mubr.f32.mxu0 %v119
    %222 = vmatmul.mubr.f32.gmra.mrb[0].mxu0 %v57
    %v223 = vpop.f32.mrb[0].mxu0
    %v224 = vadd.f32 0.0, %v223
    %v225 = vpop.f32.mrb[0].mxu0
    %v226 = vadd.f32 0.0, %v225
    %227 = vdwg.mxu0
    %v228 = vld [vmem:[%s3] sm:$0xff]
    %v229 = vld [vmem:[%s3 + $0x8] sm:$0xff]
    %v230 = vld [vmem:[%s3 + $0x10] sm:$0xff]
    %v231 = vld [vmem:[%s3 + $0x18] sm:$0xff]
    %v232 = vld [vmem:[%s3 + $0x20] sm:$0xff]
    %v233 = vld [vmem:[%s3 + $0x28] sm:$0xff]
    %v234 = vld [vmem:[%s3 + $0x30] sm:$0xff]
    %v235 = vld [vmem:[%s3 + $0x38] sm:$0xff]
    %vm236 = vcmask 457728
    %v238 = vsel %vm236, %v228, 0
    %v241 = vsel %vm236, %v229, 0
    %v244 = vsel %vm236, %v230, 0
    %v247 = vsel %vm236, %v231, 0
    %v250 = vsel %vm236, %v232, 0
    %v253 = vsel %vm236, %v233, 0
    %v256 = vsel %vm236, %v234, 0
    %v259 = vsel %vm236, %v235, 0
    %261 = vmatprep.subr.mxu0 %v190
    %262 = vmatpush1.msra.mxu0 %v188
    %263 = vmatprep.subr.mxu0 %v196
    %264 = vmatpush1.msra.mxu0 %v194
    %265 = vmatprep.subr.mxu0 %v202
    %266 = vmatpush1.msra.mxu0 %v200
    %267 = vmatprep.subr.mxu0 %v208
    %268 = vmatpush1.msra.mxu0 %v206
    %269 = vmatprep.subr.mxu0 %v214
    %270 = vmatpush1.msra.mxu0 %v212
    %271 = vmatprep.subr.mxu0 %v220
    %272 = vmatpush1.msra.mxu0 %v218
    %273 = vmatprep.subr.mxu0 %v226
    %274 = vmatpush1.msra.mxu0 %v224
    %275 = vmatprep.subr.mxu0 0.0
    %276 = vmatpush1.msra.mxu0 0.0
    %277 = vmatprep.subr.mxu0 0.0
    %278 = vmatpush1.msra.mxu0 0.0
    %279 = vmatprep.subr.mxu0 0.0
    %280 = vmatpush1.msra.mxu0 0.0
    %281 = vmatprep.subr.mxu0 0.0
    %282 = vmatpush1.msra.mxu0 0.0
    %283 = vmatprep.subr.mxu0 0.0
    %284 = vmatpush1.msra.mxu0 0.0
    %285 = vmatprep.subr.mxu0 0.0
    %286 = vmatpush1.msra.mxu0 0.0
    %287 = vmatprep.subr.mxu0 0.0
    %288 = vmatpush1.msra.mxu0 0.0
    %289 = vmatprep.subr.mxu0 0.0
    %290 = vmatpush1.msra.mxu0 0.0
    %291 = vmatprep.subr.mxu0 0.0
    %292 = vmatpush1.msra.mxu0 0.0
    %293 = vmatprep.subr.mxu0 0.0
    %294 = vmatpush1.msra.mxu0 0.0
    %295 = vmatprep.subr.mxu0 0.0
    %296 = vmatpush1.msra.mxu0 0.0
    %297 = vmatprep.subr.mxu0 0.0
    %298 = vmatpush1.msra.mxu0 0.0
    %299 = vmatprep.subr.mxu0 0.0
    %300 = vmatpush1.msra.mxu0 0.0
    %301 = vmatprep.subr.mxu0 0.0
    %302 = vmatpush1.msra.mxu0 0.0
    %303 = vmatprep.subr.mxu0 0.0
    %304 = vmatpush1.msra.mxu0 0.0
    %305 = vmatprep.subr.mxu0 0.0
    %306 = vmatpush1.msra.mxu0 0.0
    %307 = vmatprep.subr.mxu0 0.0
    %308 = vmatpush1.msra.mxu0 0.0
    %309 = vmatprep.subr.mxu0 0.0
    %310 = vmatpush1.msra.mxu0 0.0
    %311 = vmatprep.subr.mxu0 0.0
    %312 = vmatpush1.msra.mxu0 0.0
    %313 = vmatprep.subr.mxu0 0.0
    %314 = vmatpush1.msra.mxu0 0.0
    %315 = vmatprep.subr.mxu0 0.0
    %316 = vmatpush1.msra.mxu0 0.0
    %317 = vmatprep.subr.mxu0 0.0
    %318 = vmatpush1.msra.mxu0 0.0
    %319 = vmatprep.subr.mxu0 0.0
    %320 = vmatpush1.msra.mxu0 0.0
    %321 = vmatprep.subr.mxu0 0.0
    %322 = vmatpush1.msra.mxu0 0.0
    %323 = vmatprep.subr.mxu0 0.0
    %324 = vmatpush1.msra.mxu0 0.0
    %325 = vmatprep.mubr.f32.mxu0 0.0
    %326 = vmatmul.mubr.f32.gmra.mrb[0].mxu0 %v238
    %v327 = vpop.f32.mrb[0].mxu0
    %v328 = vadd.f32 0.0, %v327
    %v329 = vpop.f32.mrb[0].mxu0
    %v330 = vadd.f32 0.0, %v329
    %331 = vmatprep.mubr.f32.mxu0 0.0
    %332 = vmatmul.mubr.f32.gmra.mrb[0].mxu0 %v241
    %v333 = vpop.f32.mrb[0].mxu0
    %v334 = vadd.f32 0.0, %v333
    %v335 = vpop.f32.mrb[0].mxu0
    %v336 = vadd.f32 0.0, %v335
    %337 = vmatprep.mubr.f32.mxu0 0.0
    %338 = vmatmul.mubr.f32.gmra.mrb[0].mxu0 %v244
    %v339 = vpop.f32.mrb[0].mxu0
    %v340 = vadd.f32 0.0, %v339
    %v341 = vpop.f32.mrb[0].mxu0
    %v342 = vadd.f32 0.0, %v341
    %343 = vmatprep.mubr.f32.mxu0 0.0
    %344 = vmatmul.mubr.f32.gmra.mrb[0].mxu0 %v247
    %v345 = vpop.f32.mrb[0].mxu0
    %v346 = vadd.f32 0.0, %v345
    %v347 = vpop.f32.mrb[0].mxu0
    %v348 = vadd.f32 0.0, %v347
    %349 = vmatprep.mubr.f32.mxu0 0.0
    %350 = vmatmul.mubr.f32.gmra.mrb[0].mxu0 %v250
    %v351 = vpop.f32.mrb[0].mxu0
    %v352 = vadd.f32 0.0, %v351
    %v353 = vpop.f32.mrb[0].mxu0
    %v354 = vadd.f32 0.0, %v353
    %355 = vmatprep.mubr.f32.mxu0 0.0
    %356 = vmatmul.mubr.f32.gmra.mrb[0].mxu0 %v253
    %v357 = vpop.f32.mrb[0].mxu0
    %v358 = vadd.f32 0.0, %v357
    %v359 = vpop.f32.mrb[0].mxu0
    %v360 = vadd.f32 0.0, %v359
    %361 = vmatprep.mubr.f32.mxu0 0.0
    %362 = vmatmul.mubr.f32.gmra.mrb[0].mxu0 %v256
    %v363 = vpop.f32.mrb[0].mxu0
    %v364 = vadd.f32 0.0, %v363
    %v365 = vpop.f32.mrb[0].mxu0
    %v366 = vadd.f32 0.0, %v365
    %367 = vmatprep.mubr.f32.mxu0 0.0
    %368 = vmatmul.mubr.f32.gmra.mrb[0].mxu0 %v259
    %v369 = vpop.f32.mrb[0].mxu0
    %v370 = vadd.f32 0.0, %v369
    %v371 = vpop.f32.mrb[0].mxu0
    %v372 = vadd.f32 0.0, %v371
    %373 = vdwg.mxu0
    %v374 = vmax.f32 %v328, %v352
    %v375 = vmax.f32 %v330, %v354
    %v376 = vmax.f32 %v334, %v358
    %v377 = vmax.f32 %v336, %v360
    %v378 = vmax.f32 %v340, %v364
    %v379 = vmax.f32 %v342, %v366
    %v380 = vmax.f32 %v346, %v370
    %v381 = vmax.f32 %v348, %v372
    %v382 = vld [vmem:[%s4] sm:$0xff]
    %v383 = vld [vmem:[%s4 + $0x8] sm:$0xff]
    %v384 = vld [vmem:[%s4 + $0x10] sm:$0xff]
    %v385 = vld [vmem:[%s4 + $0x18] sm:$0xff]
    %v386 = vld [vmem:[%s4 + $0x20] sm:$0xff]
    %v387 = vld [vmem:[%s4 + $0x28] sm:$0xff]
    %v388 = vld [vmem:[%s4 + $0x30] sm:$0xff]
    %v389 = vld [vmem:[%s4 + $0x38] sm:$0xff]
    %v390 = vld [vmem:[%s4 + $0x40] sm:$0xff]
    %v391 = vld [vmem:[%s4 + $0x48] sm:$0xff]
    %v392 = vld [vmem:[%s4 + $0x50] sm:$0xff]
    %v393 = vld [vmem:[%s4 + $0x58] sm:$0xff]
    %v394 = vld [vmem:[%s4 + $0x60] sm:$0xff]
    %v395 = vld [vmem:[%s4 + $0x68] sm:$0xff]
    %v396 = vld [vmem:[%s4 + $0x70] sm:$0xff]
    %v397 = vld [vmem:[%s4 + $0x78] sm:$0xff]
    %v398 = vld [vmem:[%s4 + $0x80] sm:$0xff]
    %v399 = vld [vmem:[%s4 + $0x88] sm:$0xff]
    %v400 = vld [vmem:[%s4 + $0x90] sm:$0xff]
    %v401 = vld [vmem:[%s4 + $0x98] sm:$0xff]
    %v402 = vld [vmem:[%s4 + $0xa0] sm:$0xff]
    %v403 = vld [vmem:[%s4 + $0xa8] sm:$0xff]
    %v404 = vld [vmem:[%s4 + $0xb0] sm:$0xff]
    %v405 = vld [vmem:[%s4 + $0xb8] sm:$0xff]
    %v406 = vld [vmem:[%s4 + $0xc0] sm:$0xff]
    %v407 = vld [vmem:[%s4 + $0xc8] sm:$0xff]
    %v408 = vld [vmem:[%s4 + $0xd0] sm:$0xff]
    %v409 = vld [vmem:[%s4 + $0xd8] sm:$0xff]
    %v410 = vld [vmem:[%s4 + $0xe0] sm:$0xff]
    %v411 = vld [vmem:[%s4 + $0xe8] sm:$0xff]
    %v412 = vld [vmem:[%s4 + $0xf0] sm:$0xff]
    %v413 = vld [vmem:[%s4 + $0xf8] sm:$0xff]
    %v414 = vld [vmem:[%s4 + $0x100] sm:$0xff]
    %v415 = vld [vmem:[%s4 + $0x108] sm:$0xff]
    %v416 = vld [vmem:[%s4 + $0x110] sm:$0xff]
    %v417 = vld [vmem:[%s4 + $0x118] sm:$0xff]
    %v418 = vld [vmem:[%s4 + $0x120] sm:$0xff]
    %v419 = vld [vmem:[%s4 + $0x128] sm:$0xff]
    %v420 = vld [vmem:[%s4 + $0x130] sm:$0xff]
    %v421 = vld [vmem:[%s4 + $0x138] sm:$0xff]
    %v422 = vld [vmem:[%s4 + $0x140] sm:$0xff]
    %v423 = vld [vmem:[%s4 + $0x148] sm:$0xff]
    %vm424 = vcmask 326656
    %v426 = vsel %vm424, %v375, 0
    %v429 = vsel %vm424, %v377, 0
    %v432 = vsel %vm424, %v379, 0
    %v435 = vsel %vm424, %v381, 0
    %437 = vmatprep.subr.mxu0 %v383
    %438 = vmatpush1.msra.mxu0 %v382
    %439 = vmatprep.subr.mxu0 %v385
    %440 = vmatpush1.msra.mxu0 %v384
    %441 = vmatprep.subr.mxu0 %v387
    %442 = vmatpush1.msra.mxu0 %v386
    %443 = vmatprep.subr.mxu0 %v389
    %444 = vmatpush1.msra.mxu0 %v388
    %445 = vmatprep.subr.mxu0 %v391
    %446 = vmatpush1.msra.mxu0 %v390
    %447 = vmatprep.subr.mxu0 %v393
    %448 = vmatpush1.msra.mxu0 %v392
    %449 = vmatprep.subr.mxu0 %v395
    %450 = vmatpush1.msra.mxu0 %v394
    %451 = vmatprep.subr.mxu0 %v397
    %452 = vmatpush1.msra.mxu0 %v396
    %453 = vmatprep.subr.mxu0 %v399
    %454 = vmatpush1.msra.mxu0 %v398
    %455 = vmatprep.subr.mxu0 %v401
    %456 = vmatpush1.msra.mxu0 %v400
    %457 = vmatprep.subr.mxu0 %v403
    %458 = vmatpush1.msra.mxu0 %v402
    %459 = vmatprep.subr.mxu0 %v405
    %460 = vmatpush1.msra.mxu0 %v404
    %461 = vmatprep.subr.mxu0 %v407
    %462 = vmatpush1.msra.mxu0 %v406
    %463 = vmatprep.subr.mxu0 %v409
    %464 = vmatpush1.msra.mxu0 %v408
    %465 = vmatprep.subr.mxu0 %v411
    %466 = vmatpush1.msra.mxu0 %v410
    %467 = vmatprep.subr.mxu0 %v413
    %468 = vmatpush1.msra.mxu0 %v412
    %469 = vmatprep.subr.mxu0 %v415
    %470 = vmatpush1.msra.mxu0 %v414
    %471 = vmatprep.subr.mxu0 %v417
    %472 = vmatpush1.msra.mxu0 %v416
    %473 = vmatprep.subr.mxu0 %v419
    %474 = vmatpush1.msra.mxu0 %v418
    %475 = vmatprep.subr.mxu0 %v421
    %476 = vmatpush1.msra.mxu0 %v420
    %477 = vmatprep.subr.mxu0 %v423
    %478 = vmatpush1.msra.mxu0 %v422
    %479 = vmatprep.subr.mxu0 0.0
    %480 = vmatpush1.msra.mxu0 0.0
    %481 = vmatprep.subr.mxu0 0.0
    %482 = vmatpush1.msra.mxu0 0.0
    %483 = vmatprep.subr.mxu0 0.0
    %484 = vmatpush1.msra.mxu0 0.0
    %485 = vmatprep.subr.mxu0 0.0
    %486 = vmatpush1.msra.mxu0 0.0
    %487 = vmatprep.subr.mxu0 0.0
    %488 = vmatpush1.msra.mxu0 0.0
    %489 = vmatprep.subr.mxu0 0.0
    %490 = vmatpush1.msra.mxu0 0.0
    %491 = vmatprep.subr.mxu0 0.0
    %492 = vmatpush1.msra.mxu0 0.0
    %493 = vmatprep.subr.mxu0 0.0
    %494 = vmatpush1.msra.mxu0 0.0
    %495 = vmatprep.subr.mxu0 0.0
    %496 = vmatpush1.msra.mxu0 0.0
    %497 = vmatprep.subr.mxu0 0.0
    %498 = vmatpush1.msra.mxu0 0.0
    %499 = vmatprep.subr.mxu0 0.0
    %500 = vmatpush1.msra.mxu0 0.0
    %501 = vmatprep.mubr.f32.mxu0 %v426
    %502 = vmatmul.mubr.f32.gmra.mrb[0].mxu0 %v374
    %v503 = vpop.f32.mrb[0].mxu0
    %v504 = vadd.f32 0.0, %v503
    %v505 = vpop.f32.mrb[0].mxu0
    %v506 = vadd.f32 0.0, %v505
    %507 = vmatprep.mubr.f32.mxu0 %v429
    %508 = vmatmul.mubr.f32.gmra.mrb[0].mxu0 %v376
    %v509 = vpop.f32.mrb[0].mxu0
    %v510 = vadd.f32 0.0, %v509
    %v511 = vpop.f32.mrb[0].mxu0
    %v512 = vadd.f32 0.0, %v511
    %513 = vmatprep.mubr.f32.mxu0 %v432
    %514 = vmatmul.mubr.f32.gmra.mrb[0].mxu0 %v378
    %v515 = vpop.f32.mrb[0].mxu0
    %v516 = vadd.f32 0.0, %v515
    %v517 = vpop.f32.mrb[0].mxu0
    %v518 = vadd.f32 0.0, %v517
    %519 = vmatprep.mubr.f32.mxu0 %v435
    %520 = vmatmul.mubr.f32.gmra.mrb[0].mxu0 %v380
    %v521 = vpop.f32.mrb[0].mxu0
    %v522 = vadd.f32 0.0, %v521
    %v523 = vpop.f32.mrb[0].mxu0
    %v524 = vadd.f32 0.0, %v523
    %525 = vdwg.mxu0
    %v526 = vmax.f32 %v504, %v506
    %v527 = vmax.f32 %v510, %v512
    %v528 = vmax.f32 %v516, %v518
    %v529 = vmax.f32 %v522, %v524
    %v530 = vld [vmem:[%s2] sm:$0x1]
    %v532 = vlaneseq
    %v533 = vshrl.u32 %v532, 7
    %v534 = vsub.s32 0, %v533
    %v535 = vrot.slane %v530, %v534
    %v537 = vadd.f32 %v526, %v535
    %v538 = vadd.f32 %v527, %v535
    %v539 = vadd.f32 %v528, %v535
    %v540 = vadd.f32 %v529, %v535
    %v541 = vld [vmem:[%s5] sm:$0xff]
    %v542 = vld [vmem:[%s5 + $0x8] sm:$0xff]
    %v543 = vld [vmem:[%s5 + $0x10] sm:$0xff]
    %v544 = vld [vmem:[%s5 + $0x18] sm:$0xff]
    %v545 = vld [vmem:[%s5 + $0x20] sm:$0xff]
    %v546 = vld [vmem:[%s5 + $0x28] sm:$0xff]
    %v547 = vld [vmem:[%s5 + $0x30] sm:$0xff]
    %v548 = vld [vmem:[%s5 + $0x38] sm:$0xff]
    %v549 = vld [vmem:[%s5 + $0x40] sm:$0xff]
    %v550 = vld [vmem:[%s5 + $0x48] sm:$0xff]
    %v551 = vld [vmem:[%s5 + $0x50] sm:$0xff]
    %v552 = vld [vmem:[%s5 + $0x58] sm:$0xff]
    %v553 = vld [vmem:[%s5 + $0x60] sm:$0xff]
    %v554 = vld [vmem:[%s5 + $0x68] sm:$0xff]
    %v555 = vld [vmem:[%s5 + $0x70] sm:$0xff]
    %v556 = vld [vmem:[%s5 + $0x78] sm:$0xff]
    %v557 = vld [vmem:[%s5 + $0x80] sm:$0xff]
    %v558 = vld [vmem:[%s5 + $0x88] sm:$0xff]
    %v559 = vld [vmem:[%s5 + $0x90] sm:$0xff]
    %v560 = vld [vmem:[%s5 + $0x98] sm:$0xff]
    %v561 = vld [vmem:[%s5 + $0xa0] sm:$0xff]
    %v562 = vld [vmem:[%s5 + $0xa8] sm:$0xff]
    %v563 = vld [vmem:[%s5 + $0xb0] sm:$0xff]
    %v564 = vld [vmem:[%s5 + $0xb8] sm:$0xff]
    %v565 = vld [vmem:[%s5 + $0xc0] sm:$0xff]
    %v566 = vld [vmem:[%s5 + $0xc8] sm:$0xff]
    %v567 = vld [vmem:[%s5 + $0xd0] sm:$0xff]
    %v568 = vld [vmem:[%s5 + $0xd8] sm:$0xff]
    %v569 = vld [vmem:[%s5 + $0xe0] sm:$0xff]
    %v570 = vld [vmem:[%s5 + $0xe8] sm:$0xff]
    %v571 = vld [vmem:[%s5 + $0xf0] sm:$0xff]
    %v572 = vld [vmem:[%s5 + $0xf8] sm:$0xff]
    %s573 = scalar_lea.vmem %s5, 256
    %v574 = vld [vmem:[%s573] sm:$0xff]
    %v575 = vld [vmem:[%s573 + $0x8] sm:$0xff]
    %v576 = vld [vmem:[%s573 + $0x10] sm:$0xff]
    %v577 = vld [vmem:[%s573 + $0x18] sm:$0xff]
    %v578 = vld [vmem:[%s573 + $0x20] sm:$0xff]
    %v579 = vld [vmem:[%s573 + $0x28] sm:$0xff]
    %v580 = vld [vmem:[%s573 + $0x30] sm:$0xff]
    %v581 = vld [vmem:[%s573 + $0x38] sm:$0xff]
    %v582 = vld [vmem:[%s573 + $0x40] sm:$0xff]
    %v583 = vld [vmem:[%s573 + $0x48] sm:$0xff]
    %v584 = vld [vmem:[%s573 + $0x50] sm:$0xff]
    %v585 = vld [vmem:[%s573 + $0x58] sm:$0xff]
    %v586 = vld [vmem:[%s573 + $0x60] sm:$0xff]
    %v587 = vld [vmem:[%s573 + $0x68] sm:$0xff]
    %v588 = vld [vmem:[%s573 + $0x70] sm:$0xff]
    %v589 = vld [vmem:[%s573 + $0x78] sm:$0xff]
    %v590 = vld [vmem:[%s573 + $0x80] sm:$0xff]
    %v591 = vld [vmem:[%s573 + $0x88] sm:$0xff]
    %v592 = vld [vmem:[%s573 + $0x90] sm:$0xff]
    %v593 = vld [vmem:[%s573 + $0x98] sm:$0xff]
    %v594 = vld [vmem:[%s573 + $0xa0] sm:$0xff]
    %v595 = vld [vmem:[%s573 + $0xa8] sm:$0xff]
    %v596 = vld [vmem:[%s573 + $0xb0] sm:$0xff]
    %v597 = vld [vmem:[%s573 + $0xb8] sm:$0xff]
    %v598 = vld [vmem:[%s573 + $0xc0] sm:$0xff]
    %v599 = vld [vmem:[%s573 + $0xc8] sm:$0xff]
    %v600 = vld [vmem:[%s573 + $0xd0] sm:$0xff]
    %v601 = vld [vmem:[%s573 + $0xd8] sm:$0xff]
    %v602 = vld [vmem:[%s573 + $0xe0] sm:$0xff]
    %v603 = vld [vmem:[%s573 + $0xe8] sm:$0xff]
    %v604 = vld [vmem:[%s573 + $0xf0] sm:$0xff]
    %v605 = vld [vmem:[%s573 + $0xf8] sm:$0xff]
    %vm610 = vcmask 1046528
    %v611 = vrot.slane %v537, 1
    %v612 = vrot.slane %v538, 1
    %v613 = vsel %vm610, %v611, %v612
    %v614 = vrot.slane %v539, 1
    %v615 = vsel %vm610, %v612, %v614
    %v616 = vrot.slane %v540, 1
    %v617 = vsel %vm610, %v614, %v616
    %621 = vmatprep.subr.mxu0 %v575
    %622 = vmatpush1.msra.mxu0 %v574
    %623 = vmatprep.subr.mxu0 %v577
    %624 = vmatpush1.msra.mxu0 %v576
    %625 = vmatprep.subr.mxu0 %v579
    %626 = vmatpush1.msra.mxu0 %v578
    %627 = vmatprep.subr.mxu0 %v581
    %628 = vmatpush1.msra.mxu0 %v580
    %629 = vmatprep.subr.mxu0 %v583
    %630 = vmatpush1.msra.mxu0 %v582
    %631 = vmatprep.subr.mxu0 %v585
    %632 = vmatpush1.msra.mxu0 %v584
    %633 = vmatprep.subr.mxu0 %v587
    %634 = vmatpush1.msra.mxu0 %v586
    %635 = vmatprep.subr.mxu0 %v589
    %636 = vmatpush1.msra.mxu0 %v588
    %637 = vmatprep.subr.mxu0 %v591
    %638 = vmatpush1.msra.mxu0 %v590
    %639 = vmatprep.subr.mxu0 %v593
    %640 = vmatpush1.msra.mxu0 %v592
    %641 = vmatprep.subr.mxu0 %v595
    %642 = vmatpush1.msra.mxu0 %v594
    %643 = vmatprep.subr.mxu0 %v597
    %644 = vmatpush1.msra.mxu0 %v596
    %645 = vmatprep.subr.mxu0 %v599
    %646 = vmatpush1.msra.mxu0 %v598
    %647 = vmatprep.subr.mxu0 %v601
    %648 = vmatpush1.msra.mxu0 %v600
    %649 = vmatprep.subr.mxu0 %v603
    %650 = vmatpush1.msra.mxu0 %v602
    %651 = vmatprep.subr.mxu0 %v605
    %652 = vmatpush1.msra.mxu0 %v604
    %653 = vmatprep.subr.mxu0 0.0
    %654 = vmatpush1.msra.mxu0 0.0
    %655 = vmatprep.subr.mxu0 0.0
    %656 = vmatpush1.msra.mxu0 0.0
    %657 = vmatprep.subr.mxu0 0.0
    %658 = vmatpush1.msra.mxu0 0.0
    %659 = vmatprep.subr.mxu0 0.0
    %660 = vmatpush1.msra.mxu0 0.0
    %661 = vmatprep.subr.mxu0 0.0
    %662 = vmatpush1.msra.mxu0 0.0
    %663 = vmatprep.subr.mxu0 0.0
    %664 = vmatpush1.msra.mxu0 0.0
    %665 = vmatprep.subr.mxu0 0.0
    %666 = vmatpush1.msra.mxu0 0.0
    %667 = vmatprep.subr.mxu0 0.0
    %668 = vmatpush1.msra.mxu0 0.0
    %669 = vmatprep.subr.mxu0 0.0
    %670 = vmatpush1.msra.mxu0 0.0
    %671 = vmatprep.subr.mxu0 0.0
    %672 = vmatpush1.msra.mxu0 0.0
    %673 = vmatprep.subr.mxu0 0.0
    %674 = vmatpush1.msra.mxu0 0.0
    %675 = vmatprep.subr.mxu0 0.0
    %676 = vmatpush1.msra.mxu0 0.0
    %677 = vmatprep.subr.mxu0 0.0
    %678 = vmatpush1.msra.mxu0 0.0
    %679 = vmatprep.subr.mxu0 0.0
    %680 = vmatpush1.msra.mxu0 0.0
    %681 = vmatprep.subr.mxu0 0.0
    %682 = vmatpush1.msra.mxu0 0.0
    %683 = vmatprep.subr.mxu0 0.0
    %684 = vmatpush1.msra.mxu0 0.0
    %685 = vmatprep.mubr.f32.mxu0 0.0
    %686 = vmatmul.mubr.f32.gmra.mrb[0].mxu0 %v613
    %v687 = vpop.f32.mrb[0].mxu0
    %v688 = vadd.f32 0.0, %v687
    %v689 = vpop.f32.mrb[0].mxu0
    %v690 = vadd.f32 0.0, %v689
    %691 = vmatprep.mubr.f32.mxu0 0.0
    %692 = vmatmul.mubr.f32.gmra.mrb[0].mxu0 %v615
    %v693 = vpop.f32.mrb[0].mxu0
    %v694 = vadd.f32 0.0, %v693
    %v695 = vpop.f32.mrb[0].mxu0
    %v696 = vadd.f32 0.0, %v695
    %697 = vmatprep.mubr.f32.mxu0 0.0
    %698 = vmatmul.mubr.f32.gmra.mrb[0].mxu0 %v617
    %v699 = vpop.f32.mrb[0].mxu0
    %v700 = vadd.f32 0.0, %v699
    %v701 = vpop.f32.mrb[0].mxu0
    %v702 = vadd.f32 0.0, %v701
    %703 = vdwg.mxu0
    %704 = vmatprep.subr.mxu0 %v542
    %705 = vmatpush1.msra.mxu0 %v541
    %706 = vmatprep.subr.mxu0 %v544
    %707 = vmatpush1.msra.mxu0 %v543
    %708 = vmatprep.subr.mxu0 %v546
    %709 = vmatpush1.msra.mxu0 %v545
    %710 = vmatprep.subr.mxu0 %v548
    %711 = vmatpush1.msra.mxu0 %v547
    %712 = vmatprep.subr.mxu0 %v550
    %713 = vmatpush1.msra.mxu0 %v549
    %714 = vmatprep.subr.mxu0 %v552
    %715 = vmatpush1.msra.mxu0 %v551
    %716 = vmatprep.subr.mxu0 %v554
    %717 = vmatpush1.msra.mxu0 %v553
    %718 = vmatprep.subr.mxu0 %v556
    %719 = vmatpush1.msra.mxu0 %v555
    %720 = vmatprep.subr.mxu0 %v558
    %721 = vmatpush1.msra.mxu0 %v557
    %722 = vmatprep.subr.mxu0 %v560
    %723 = vmatpush1.msra.mxu0 %v559
    %724 = vmatprep.subr.mxu0 %v562
    %725 = vmatpush1.msra.mxu0 %v561
    %726 = vmatprep.subr.mxu0 %v564
    %727 = vmatpush1.msra.mxu0 %v563
    %728 = vmatprep.subr.mxu0 %v566
    %729 = vmatpush1.msra.mxu0 %v565
    %730 = vmatprep.subr.mxu0 %v568
    %731 = vmatpush1.msra.mxu0 %v567
    %732 = vmatprep.subr.mxu0 %v570
    %733 = vmatpush1.msra.mxu0 %v569
    %734 = vmatprep.subr.mxu0 %v572
    %735 = vmatpush1.msra.mxu0 %v571
    %736 = vmatprep.subr.mxu0 0.0
    %737 = vmatpush1.msra.mxu0 0.0
    %738 = vmatprep.subr.mxu0 0.0
    %739 = vmatpush1.msra.mxu0 0.0
    %740 = vmatprep.subr.mxu0 0.0
    %741 = vmatpush1.msra.mxu0 0.0
    %742 = vmatprep.subr.mxu0 0.0
    %743 = vmatpush1.msra.mxu0 0.0
    %744 = vmatprep.subr.mxu0 0.0
    %745 = vmatpush1.msra.mxu0 0.0
    %746 = vmatprep.subr.mxu0 0.0
    %747 = vmatpush1.msra.mxu0 0.0
    %748 = vmatprep.subr.mxu0 0.0
    %749 = vmatpush1.msra.mxu0 0.0
    %750 = vmatprep.subr.mxu0 0.0
    %751 = vmatpush1.msra.mxu0 0.0
    %752 = vmatprep.subr.mxu0 0.0
    %753 = vmatpush1.msra.mxu0 0.0
    %754 = vmatprep.subr.mxu0 0.0
    %755 = vmatpush1.msra.mxu0 0.0
    %756 = vmatprep.subr.mxu0 0.0
    %757 = vmatpush1.msra.mxu0 0.0
    %758 = vmatprep.subr.mxu0 0.0
    %759 = vmatpush1.msra.mxu0 0.0
    %760 = vmatprep.subr.mxu0 0.0
    %761 = vmatpush1.msra.mxu0 0.0
    %762 = vmatprep.subr.mxu0 0.0
    %763 = vmatpush1.msra.mxu0 0.0
    %764 = vmatprep.subr.mxu0 0.0
    %765 = vmatpush1.msra.mxu0 0.0
    %766 = vmatprep.subr.mxu0 0.0
    %767 = vmatpush1.msra.mxu0 0.0
    %768 = vmatprep.mubr.f32.mxu0 0.0
    %769 = vmatmul.mubr.f32.gmra.mrb[0].mxu0 %v537
    %v770 = vpop.f32.mrb[0].mxu0
    %v771 = vadd.f32 %v688, %v770
    %v772 = vpop.f32.mrb[0].mxu0
    %v773 = vadd.f32 %v690, %v772
    %774 = vmatprep.mubr.f32.mxu0 0.0
    %775 = vmatmul.mubr.f32.gmra.mrb[0].mxu0 %v538
    %v776 = vpop.f32.mrb[0].mxu0
    %v777 = vadd.f32 %v694, %v776
    %v778 = vpop.f32.mrb[0].mxu0
    %v779 = vadd.f32 %v696, %v778
    %780 = vmatprep.mubr.f32.mxu0 0.0
    %781 = vmatmul.mubr.f32.gmra.mrb[0].mxu0 %v539
    %v782 = vpop.f32.mrb[0].mxu0
    %v783 = vadd.f32 %v700, %v782
    %v784 = vpop.f32.mrb[0].mxu0
    %v785 = vadd.f32 %v702, %v784
    %786 = vdwg.mxu0
    %s787 = scalar_lea.vmem %s5, 512
    %v788 = vld [vmem:[%s787] sm:$0xff]
    %v789 = vld [vmem:[%s787 + $0x8] sm:$0xff]
    %v790 = vld [vmem:[%s787 + $0x10] sm:$0xff]
    %v791 = vld [vmem:[%s787 + $0x18] sm:$0xff]
    %v792 = vld [vmem:[%s787 + $0x20] sm:$0xff]
    %v793 = vld [vmem:[%s787 + $0x28] sm:$0xff]
    %v794 = vld [vmem:[%s787 + $0x30] sm:$0xff]
    %v795 = vld [vmem:[%s787 + $0x38] sm:$0xff]
    %v796 = vld [vmem:[%s787 + $0x40] sm:$0xff]
    %v797 = vld [vmem:[%s787 + $0x48] sm:$0xff]
    %v798 = vld [vmem:[%s787 + $0x50] sm:$0xff]
    %v799 = vld [vmem:[%s787 + $0x58] sm:$0xff]
    %v800 = vld [vmem:[%s787 + $0x60] sm:$0xff]
    %v801 = vld [vmem:[%s787 + $0x68] sm:$0xff]
    %v802 = vld [vmem:[%s787 + $0x70] sm:$0xff]
    %v803 = vld [vmem:[%s787 + $0x78] sm:$0xff]
    %v804 = vld [vmem:[%s787 + $0x80] sm:$0xff]
    %v805 = vld [vmem:[%s787 + $0x88] sm:$0xff]
    %v806 = vld [vmem:[%s787 + $0x90] sm:$0xff]
    %v807 = vld [vmem:[%s787 + $0x98] sm:$0xff]
    %v808 = vld [vmem:[%s787 + $0xa0] sm:$0xff]
    %v809 = vld [vmem:[%s787 + $0xa8] sm:$0xff]
    %v810 = vld [vmem:[%s787 + $0xb0] sm:$0xff]
    %v811 = vld [vmem:[%s787 + $0xb8] sm:$0xff]
    %v812 = vld [vmem:[%s787 + $0xc0] sm:$0xff]
    %v813 = vld [vmem:[%s787 + $0xc8] sm:$0xff]
    %v814 = vld [vmem:[%s787 + $0xd0] sm:$0xff]
    %v815 = vld [vmem:[%s787 + $0xd8] sm:$0xff]
    %v816 = vld [vmem:[%s787 + $0xe0] sm:$0xff]
    %v817 = vld [vmem:[%s787 + $0xe8] sm:$0xff]
    %v818 = vld [vmem:[%s787 + $0xf0] sm:$0xff]
    %v819 = vld [vmem:[%s787 + $0xf8] sm:$0xff]
    %vm820 = vcmask 1045504
    %v821 = vrot.slane %v537, 2
    %v822 = vrot.slane %v538, 2
    %v823 = vsel %vm820, %v821, %v822
    %v824 = vrot.slane %v539, 2
    %v825 = vsel %vm820, %v822, %v824
    %v826 = vrot.slane %v540, 2
    %v827 = vsel %vm820, %v824, %v826
    %831 = vmatprep.subr.mxu0 %v789
    %832 = vmatpush1.msra.mxu0 %v788
    %833 = vmatprep.subr.mxu0 %v791
    %834 = vmatpush1.msra.mxu0 %v790
    %835 = vmatprep.subr.mxu0 %v793
    %836 = vmatpush1.msra.mxu0 %v792
    %837 = vmatprep.subr.mxu0 %v795
    %838 = vmatpush1.msra.mxu0 %v794
    %839 = vmatprep.subr.mxu0 %v797
    %840 = vmatpush1.msra.mxu0 %v796
    %841 = vmatprep.subr.mxu0 %v799
    %842 = vmatpush1.msra.mxu0 %v798
    %843 = vmatprep.subr.mxu0 %v801
    %844 = vmatpush1.msra.mxu0 %v800
    %845 = vmatprep.subr.mxu0 %v803
    %846 = vmatpush1.msra.mxu0 %v802
    %847 = vmatprep.subr.mxu0 %v805
    %848 = vmatpush1.msra.mxu0 %v804
    %849 = vmatprep.subr.mxu0 %v807
    %850 = vmatpush1.msra.mxu0 %v806
    %851 = vmatprep.subr.mxu0 %v809
    %852 = vmatpush1.msra.mxu0 %v808
    %853 = vmatprep.subr.mxu0 %v811
    %854 = vmatpush1.msra.mxu0 %v810
    %855 = vmatprep.subr.mxu0 %v813
    %856 = vmatpush1.msra.mxu0 %v812
    %857 = vmatprep.subr.mxu0 %v815
    %858 = vmatpush1.msra.mxu0 %v814
    %859 = vmatprep.subr.mxu0 %v817
    %860 = vmatpush1.msra.mxu0 %v816
    %861 = vmatprep.subr.mxu0 %v819
    %862 = vmatpush1.msra.mxu0 %v818
    %863 = vmatprep.subr.mxu0 0.0
    %864 = vmatpush1.msra.mxu0 0.0
    %865 = vmatprep.subr.mxu0 0.0
    %866 = vmatpush1.msra.mxu0 0.0
    %867 = vmatprep.subr.mxu0 0.0
    %868 = vmatpush1.msra.mxu0 0.0
    %869 = vmatprep.subr.mxu0 0.0
    %870 = vmatpush1.msra.mxu0 0.0
    %871 = vmatprep.subr.mxu0 0.0
    %872 = vmatpush1.msra.mxu0 0.0
    %873 = vmatprep.subr.mxu0 0.0
    %874 = vmatpush1.msra.mxu0 0.0
    %875 = vmatprep.subr.mxu0 0.0
    %876 = vmatpush1.msra.mxu0 0.0
    %877 = vmatprep.subr.mxu0 0.0
    %878 = vmatpush1.msra.mxu0 0.0
    %879 = vmatprep.subr.mxu0 0.0
    %880 = vmatpush1.msra.mxu0 0.0
    %881 = vmatprep.subr.mxu0 0.0
    %882 = vmatpush1.msra.mxu0 0.0
    %883 = vmatprep.subr.mxu0 0.0
    %884 = vmatpush1.msra.mxu0 0.0
    %885 = vmatprep.subr.mxu0 0.0
    %886 = vmatpush1.msra.mxu0 0.0
    %887 = vmatprep.subr.mxu0 0.0
    %888 = vmatpush1.msra.mxu0 0.0
    %889 = vmatprep.subr.mxu0 0.0
    %890 = vmatpush1.msra.mxu0 0.0
    %891 = vmatprep.subr.mxu0 0.0
    %892 = vmatpush1.msra.mxu0 0.0
    %893 = vmatprep.subr.mxu0 0.0
    %894 = vmatpush1.msra.mxu0 0.0
    %895 = vmatprep.mubr.f32.mxu0 0.0
    %896 = vmatmul.mubr.f32.gmra.mrb[0].mxu0 %v823
    %v897 = vpop.f32.mrb[0].mxu0
    %v898 = vadd.f32 0.0, %v897
    %v899 = vpop.f32.mrb[0].mxu0
    %v900 = vadd.f32 0.0, %v899
    %901 = vmatprep.mubr.f32.mxu0 0.0
    %902 = vmatmul.mubr.f32.gmra.mrb[0].mxu0 %v825
    %v903 = vpop.f32.mrb[0].mxu0
    %v904 = vadd.f32 0.0, %v903
    %v905 = vpop.f32.mrb[0].mxu0
    %v906 = vadd.f32 0.0, %v905
    %907 = vmatprep.mubr.f32.mxu0 0.0
    %908 = vmatmul.mubr.f32.gmra.mrb[0].mxu0 %v827
    %v909 = vpop.f32.mrb[0].mxu0
    %v910 = vadd.f32 0.0, %v909
    %v911 = vpop.f32.mrb[0].mxu0
    %v912 = vadd.f32 0.0, %v911
    %913 = vdwg.mxu0
    %v914 = vadd.f32 %v771, %v898
    %v915 = vadd.f32 %v773, %v900
    %v916 = vadd.f32 %v777, %v904
    %v917 = vadd.f32 %v779, %v906
    %v918 = vadd.f32 %v783, %v910
    %v919 = vadd.f32 %v785, %v912
    %s920 = scalar_lea.vmem %s5, 768
    %v921 = vld [vmem:[%s920] sm:$0xff]
    %v922 = vld [vmem:[%s920 + $0x8] sm:$0xff]
    %v923 = vld [vmem:[%s920 + $0x10] sm:$0xff]
    %v924 = vld [vmem:[%s920 + $0x18] sm:$0xff]
    %v925 = vld [vmem:[%s920 + $0x20] sm:$0xff]
    %v926 = vld [vmem:[%s920 + $0x28] sm:$0xff]
    %v927 = vld [vmem:[%s920 + $0x30] sm:$0xff]
    %v928 = vld [vmem:[%s920 + $0x38] sm:$0xff]
    %v929 = vld [vmem:[%s920 + $0x40] sm:$0xff]
    %v930 = vld [vmem:[%s920 + $0x48] sm:$0xff]
    %v931 = vld [vmem:[%s920 + $0x50] sm:$0xff]
    %v932 = vld [vmem:[%s920 + $0x58] sm:$0xff]
    %v933 = vld [vmem:[%s920 + $0x60] sm:$0xff]
    %v934 = vld [vmem:[%s920 + $0x68] sm:$0xff]
    %v935 = vld [vmem:[%s920 + $0x70] sm:$0xff]
    %v936 = vld [vmem:[%s920 + $0x78] sm:$0xff]
    %v937 = vld [vmem:[%s920 + $0x80] sm:$0xff]
    %v938 = vld [vmem:[%s920 + $0x88] sm:$0xff]
    %v939 = vld [vmem:[%s920 + $0x90] sm:$0xff]
    %v940 = vld [vmem:[%s920 + $0x98] sm:$0xff]
    %v941 = vld [vmem:[%s920 + $0xa0] sm:$0xff]
    %v942 = vld [vmem:[%s920 + $0xa8] sm:$0xff]
    %v943 = vld [vmem:[%s920 + $0xb0] sm:$0xff]
    %v944 = vld [vmem:[%s920 + $0xb8] sm:$0xff]
    %v945 = vld [vmem:[%s920 + $0xc0] sm:$0xff]
    %v946 = vld [vmem:[%s920 + $0xc8] sm:$0xff]
    %v947 = vld [vmem:[%s920 + $0xd0] sm:$0xff]
    %v948 = vld [vmem:[%s920 + $0xd8] sm:$0xff]
    %v949 = vld [vmem:[%s920 + $0xe0] sm:$0xff]
    %v950 = vld [vmem:[%s920 + $0xe8] sm:$0xff]
    %v951 = vld [vmem:[%s920 + $0xf0] sm:$0xff]
    %v952 = vld [vmem:[%s920 + $0xf8] sm:$0xff]
    %vm953 = vcmask 1044480
    %v954 = vrot.slane %v537, 3
    %v955 = vrot.slane %v538, 3
    %v956 = vsel %vm953, %v954, %v955
    %v957 = vrot.slane %v539, 3
    %v958 = vsel %vm953, %v955, %v957
    %v959 = vrot.slane %v540, 3
    %v960 = vsel %vm953, %v957, %v959
    %964 = vmatprep.subr.mxu0 %v922
    %965 = vmatpush1.msra.mxu0 %v921
    %966 = vmatprep.subr.mxu0 %v924
    %967 = vmatpush1.msra.mxu0 %v923
    %968 = vmatprep.subr.mxu0 %v926
    %969 = vmatpush1.msra.mxu0 %v925
    %970 = vmatprep.subr.mxu0 %v928
    %971 = vmatpush1.msra.mxu0 %v927
    %972 = vmatprep.subr.mxu0 %v930
    %973 = vmatpush1.msra.mxu0 %v929
    %974 = vmatprep.subr.mxu0 %v932
    %975 = vmatpush1.msra.mxu0 %v931
    %976 = vmatprep.subr.mxu0 %v934
    %977 = vmatpush1.msra.mxu0 %v933
    %978 = vmatprep.subr.mxu0 %v936
    %979 = vmatpush1.msra.mxu0 %v935
    %980 = vmatprep.subr.mxu0 %v938
    %981 = vmatpush1.msra.mxu0 %v937
    %982 = vmatprep.subr.mxu0 %v940
    %983 = vmatpush1.msra.mxu0 %v939
    %984 = vmatprep.subr.mxu0 %v942
    %985 = vmatpush1.msra.mxu0 %v941
    %986 = vmatprep.subr.mxu0 %v944
    %987 = vmatpush1.msra.mxu0 %v943
    %988 = vmatprep.subr.mxu0 %v946
    %989 = vmatpush1.msra.mxu0 %v945
    %990 = vmatprep.subr.mxu0 %v948
    %991 = vmatpush1.msra.mxu0 %v947
    %992 = vmatprep.subr.mxu0 %v950
    %993 = vmatpush1.msra.mxu0 %v949
    %994 = vmatprep.subr.mxu0 %v952
    %995 = vmatpush1.msra.mxu0 %v951
    %996 = vmatprep.subr.mxu0 0.0
    %997 = vmatpush1.msra.mxu0 0.0
    %998 = vmatprep.subr.mxu0 0.0
    %999 = vmatpush1.msra.mxu0 0.0
    %1000 = vmatprep.subr.mxu0 0.0
    %1001 = vmatpush1.msra.mxu0 0.0
    %1002 = vmatprep.subr.mxu0 0.0
    %1003 = vmatpush1.msra.mxu0 0.0
    %1004 = vmatprep.subr.mxu0 0.0
    %1005 = vmatpush1.msra.mxu0 0.0
    %1006 = vmatprep.subr.mxu0 0.0
    %1007 = vmatpush1.msra.mxu0 0.0
    %1008 = vmatprep.subr.mxu0 0.0
    %1009 = vmatpush1.msra.mxu0 0.0
    %1010 = vmatprep.subr.mxu0 0.0
    %1011 = vmatpush1.msra.mxu0 0.0
    %1012 = vmatprep.subr.mxu0 0.0
    %1013 = vmatpush1.msra.mxu0 0.0
    %1014 = vmatprep.subr.mxu0 0.0
    %1015 = vmatpush1.msra.mxu0 0.0
    %1016 = vmatprep.subr.mxu0 0.0
    %1017 = vmatpush1.msra.mxu0 0.0
    %1018 = vmatprep.subr.mxu0 0.0
    %1019 = vmatpush1.msra.mxu0 0.0
    %1020 = vmatprep.subr.mxu0 0.0
    %1021 = vmatpush1.msra.mxu0 0.0
    %1022 = vmatprep.subr.mxu0 0.0
    %1023 = vmatpush1.msra.mxu0 0.0
    %1024 = vmatprep.subr.mxu0 0.0
    %1025 = vmatpush1.msra.mxu0 0.0
    %1026 = vmatprep.subr.mxu0 0.0
    %1027 = vmatpush1.msra.mxu0 0.0
    %1028 = vmatprep.mubr.f32.mxu0 0.0
    %1029 = vmatmul.mubr.f32.gmra.mrb[0].mxu0 %v956
    %v1030 = vpop.f32.mrb[0].mxu0
    %v1031 = vadd.f32 0.0, %v1030
    %v1032 = vpop.f32.mrb[0].mxu0
    %v1033 = vadd.f32 0.0, %v1032
    %1034 = vmatprep.mubr.f32.mxu0 0.0
    %1035 = vmatmul.mubr.f32.gmra.mrb[0].mxu0 %v958
    %v1036 = vpop.f32.mrb[0].mxu0
    %v1037 = vadd.f32 0.0, %v1036
    %v1038 = vpop.f32.mrb[0].mxu0
    %v1039 = vadd.f32 0.0, %v1038
    %1040 = vmatprep.mubr.f32.mxu0 0.0
    %1041 = vmatmul.mubr.f32.gmra.mrb[0].mxu0 %v960
    %v1042 = vpop.f32.mrb[0].mxu0
    %v1043 = vadd.f32 0.0, %v1042
    %v1044 = vpop.f32.mrb[0].mxu0
    %v1045 = vadd.f32 0.0, %v1044
    %1046 = vdwg.mxu0
    %v1047 = vadd.f32 %v914, %v1031
    %v1048 = vadd.f32 %v915, %v1033
    %v1049 = vadd.f32 %v916, %v1037
    %v1050 = vadd.f32 %v917, %v1039
    %v1051 = vadd.f32 %v918, %v1043
    %v1052 = vadd.f32 %v919, %v1045
    %s1053 = scalar_lea.vmem %s5, 1024
    %v1054 = vld [vmem:[%s1053] sm:$0xff]
    %v1055 = vld [vmem:[%s1053 + $0x8] sm:$0xff]
    %v1056 = vld [vmem:[%s1053 + $0x10] sm:$0xff]
    %v1057 = vld [vmem:[%s1053 + $0x18] sm:$0xff]
    %v1058 = vld [vmem:[%s1053 + $0x20] sm:$0xff]
    %v1059 = vld [vmem:[%s1053 + $0x28] sm:$0xff]
    %v1060 = vld [vmem:[%s1053 + $0x30] sm:$0xff]
    %v1061 = vld [vmem:[%s1053 + $0x38] sm:$0xff]
    %v1062 = vld [vmem:[%s1053 + $0x40] sm:$0xff]
    %v1063 = vld [vmem:[%s1053 + $0x48] sm:$0xff]
    %v1064 = vld [vmem:[%s1053 + $0x50] sm:$0xff]
    %v1065 = vld [vmem:[%s1053 + $0x58] sm:$0xff]
    %v1066 = vld [vmem:[%s1053 + $0x60] sm:$0xff]
    %v1067 = vld [vmem:[%s1053 + $0x68] sm:$0xff]
    %v1068 = vld [vmem:[%s1053 + $0x70] sm:$0xff]
    %v1069 = vld [vmem:[%s1053 + $0x78] sm:$0xff]
    %v1070 = vld [vmem:[%s1053 + $0x80] sm:$0xff]
    %v1071 = vld [vmem:[%s1053 + $0x88] sm:$0xff]
    %v1072 = vld [vmem:[%s1053 + $0x90] sm:$0xff]
    %v1073 = vld [vmem:[%s1053 + $0x98] sm:$0xff]
    %v1074 = vld [vmem:[%s1053 + $0xa0] sm:$0xff]
    %v1075 = vld [vmem:[%s1053 + $0xa8] sm:$0xff]
    %v1076 = vld [vmem:[%s1053 + $0xb0] sm:$0xff]
    %v1077 = vld [vmem:[%s1053 + $0xb8] sm:$0xff]
    %v1078 = vld [vmem:[%s1053 + $0xc0] sm:$0xff]
    %v1079 = vld [vmem:[%s1053 + $0xc8] sm:$0xff]
    %v1080 = vld [vmem:[%s1053 + $0xd0] sm:$0xff]
    %v1081 = vld [vmem:[%s1053 + $0xd8] sm:$0xff]
    %v1082 = vld [vmem:[%s1053 + $0xe0] sm:$0xff]
    %v1083 = vld [vmem:[%s1053 + $0xe8] sm:$0xff]
    %v1084 = vld [vmem:[%s1053 + $0xf0] sm:$0xff]
    %v1085 = vld [vmem:[%s1053 + $0xf8] sm:$0xff]
    %vm1086 = vcmask 1043456
    %v1087 = vrot.slane %v537, 4
    %v1088 = vrot.slane %v538, 4
    %v1089 = vsel %vm1086, %v1087, %v1088
    %v1090 = vrot.slane %v539, 4
    %v1091 = vsel %vm1086, %v1088, %v1090
    %v1092 = vrot.slane %v540, 4
    %v1093 = vsel %vm1086, %v1090, %v1092
    %1097 = vmatprep.subr.mxu0 %v1055
    %1098 = vmatpush1.msra.mxu0 %v1054
    %1099 = vmatprep.subr.mxu0 %v1057
    %1100 = vmatpush1.msra.mxu0 %v1056
    %1101 = vmatprep.subr.mxu0 %v1059
    %1102 = vmatpush1.msra.mxu0 %v1058
    %1103 = vmatprep.subr.mxu0 %v1061
    %1104 = vmatpush1.msra.mxu0 %v1060
    %1105 = vmatprep.subr.mxu0 %v1063
    %1106 = vmatpush1.msra.mxu0 %v1062
    %1107 = vmatprep.subr.mxu0 %v1065
    %1108 = vmatpush1.msra.mxu0 %v1064
    %1109 = vmatprep.subr.mxu0 %v1067
    %1110 = vmatpush1.msra.mxu0 %v1066
    %1111 = vmatprep.subr.mxu0 %v1069
    %1112 = vmatpush1.msra.mxu0 %v1068
    %1113 = vmatprep.subr.mxu0 %v1071
    %1114 = vmatpush1.msra.mxu0 %v1070
    %1115 = vmatprep.subr.mxu0 %v1073
    %1116 = vmatpush1.msra.mxu0 %v1072
    %1117 = vmatprep.subr.mxu0 %v1075
    %1118 = vmatpush1.msra.mxu0 %v1074
    %1119 = vmatprep.subr.mxu0 %v1077
    %1120 = vmatpush1.msra.mxu0 %v1076
    %1121 = vmatprep.subr.mxu0 %v1079
    %1122 = vmatpush1.msra.mxu0 %v1078
    %1123 = vmatprep.subr.mxu0 %v1081
    %1124 = vmatpush1.msra.mxu0 %v1080
    %1125 = vmatprep.subr.mxu0 %v1083
    %1126 = vmatpush1.msra.mxu0 %v1082
    %1127 = vmatprep.subr.mxu0 %v1085
    %1128 = vmatpush1.msra.mxu0 %v1084
    %1129 = vmatprep.subr.mxu0 0.0
    %1130 = vmatpush1.msra.mxu0 0.0
    %1131 = vmatprep.subr.mxu0 0.0
    %1132 = vmatpush1.msra.mxu0 0.0
    %1133 = vmatprep.subr.mxu0 0.0
    %1134 = vmatpush1.msra.mxu0 0.0
    %1135 = vmatprep.subr.mxu0 0.0
    %1136 = vmatpush1.msra.mxu0 0.0
    %1137 = vmatprep.subr.mxu0 0.0
    %1138 = vmatpush1.msra.mxu0 0.0
    %1139 = vmatprep.subr.mxu0 0.0
    %1140 = vmatpush1.msra.mxu0 0.0
    %1141 = vmatprep.subr.mxu0 0.0
    %1142 = vmatpush1.msra.mxu0 0.0
    %1143 = vmatprep.subr.mxu0 0.0
    %1144 = vmatpush1.msra.mxu0 0.0
    %1145 = vmatprep.subr.mxu0 0.0
    %1146 = vmatpush1.msra.mxu0 0.0
    %1147 = vmatprep.subr.mxu0 0.0
    %1148 = vmatpush1.msra.mxu0 0.0
    %1149 = vmatprep.subr.mxu0 0.0
    %1150 = vmatpush1.msra.mxu0 0.0
    %1151 = vmatprep.subr.mxu0 0.0
    %1152 = vmatpush1.msra.mxu0 0.0
    %1153 = vmatprep.subr.mxu0 0.0
    %1154 = vmatpush1.msra.mxu0 0.0
    %1155 = vmatprep.subr.mxu0 0.0
    %1156 = vmatpush1.msra.mxu0 0.0
    %1157 = vmatprep.subr.mxu0 0.0
    %1158 = vmatpush1.msra.mxu0 0.0
    %1159 = vmatprep.subr.mxu0 0.0
    %1160 = vmatpush1.msra.mxu0 0.0
    %1161 = vmatprep.mubr.f32.mxu0 0.0
    %1162 = vmatmul.mubr.f32.gmra.mrb[0].mxu0 %v1089
    %v1163 = vpop.f32.mrb[0].mxu0
    %v1164 = vadd.f32 0.0, %v1163
    %v1165 = vpop.f32.mrb[0].mxu0
    %v1166 = vadd.f32 0.0, %v1165
    %1167 = vmatprep.mubr.f32.mxu0 0.0
    %1168 = vmatmul.mubr.f32.gmra.mrb[0].mxu0 %v1091
    %v1169 = vpop.f32.mrb[0].mxu0
    %v1170 = vadd.f32 0.0, %v1169
    %v1171 = vpop.f32.mrb[0].mxu0
    %v1172 = vadd.f32 0.0, %v1171
    %1173 = vmatprep.mubr.f32.mxu0 0.0
    %1174 = vmatmul.mubr.f32.gmra.mrb[0].mxu0 %v1093
    %v1175 = vpop.f32.mrb[0].mxu0
    %v1176 = vadd.f32 0.0, %v1175
    %v1177 = vpop.f32.mrb[0].mxu0
    %v1178 = vadd.f32 0.0, %v1177
    %1179 = vdwg.mxu0
    %v1180 = vadd.f32 %v1047, %v1164
    %v1181 = vadd.f32 %v1048, %v1166
    %v1182 = vadd.f32 %v1049, %v1170
    %v1183 = vadd.f32 %v1050, %v1172
    %v1184 = vadd.f32 %v1051, %v1176
    %v1185 = vadd.f32 %v1052, %v1178
    %v1186 = vld [vmem:[%s6] sm:$0x3]
    %v1188 = vlaneseq
    %v1189 = vshrl.u32 %v1188, 7
    %v1190 = vsub.s32 0, %v1189
    %v1191 = vrot.slane %v1186, %v1190
    %v1192 = vlaneseq
    %v1193 = vshrl.u32 %v1192, 7
    %v1194 = vsub.s32 1, %v1193
    %v1195 = vrot.slane %v1186, %v1194
    %v1198 = vadd.f32 %v1180, %v1191
    %v1199 = vadd.f32 %v1181, %v1195
    %v1200 = vadd.f32 %v1182, %v1191
    %v1201 = vadd.f32 %v1183, %v1195
    %v1202 = vadd.f32 %v1184, %v1191
    %v1203 = vadd.f32 %v1185, %v1195
    %v1204 = vld [vmem:[%s7] sm:$0xff]
    %v1205 = vld [vmem:[%s7 + $0x8] sm:$0xff]
    %v1206 = vld [vmem:[%s7 + $0x10] sm:$0xff]
    %v1207 = vld [vmem:[%s7 + $0x18] sm:$0xff]
    %v1208 = vld [vmem:[%s7 + $0x20] sm:$0xff]
    %v1209 = vld [vmem:[%s7 + $0x28] sm:$0xff]
    %v1210 = vld [vmem:[%s7 + $0x30] sm:$0xff]
    %v1211 = vld [vmem:[%s7 + $0x38] sm:$0xff]
    %v1212 = vld [vmem:[%s7 + $0x40] sm:$0xff]
    %v1213 = vld [vmem:[%s7 + $0x48] sm:$0xff]
    %v1214 = vld [vmem:[%s7 + $0x50] sm:$0xff]
    %v1215 = vld [vmem:[%s7 + $0x58] sm:$0xff]
    %v1216 = vld [vmem:[%s7 + $0x60] sm:$0xff]
    %v1217 = vld [vmem:[%s7 + $0x68] sm:$0xff]
    %v1218 = vld [vmem:[%s7 + $0x70] sm:$0xff]
    %v1219 = vld [vmem:[%s7 + $0x78] sm:$0xff]
    %v1220 = vld [vmem:[%s7 + $0x80] sm:$0xff]
    %v1221 = vld [vmem:[%s7 + $0x88] sm:$0xff]
    %v1222 = vld [vmem:[%s7 + $0x90] sm:$0xff]
    %v1223 = vld [vmem:[%s7 + $0x98] sm:$0xff]
    %v1224 = vld [vmem:[%s7 + $0xa0] sm:$0xff]
    %v1225 = vld [vmem:[%s7 + $0xa8] sm:$0xff]
    %v1226 = vld [vmem:[%s7 + $0xb0] sm:$0xff]
    %v1227 = vld [vmem:[%s7 + $0xb8] sm:$0xff]
    %v1228 = vld [vmem:[%s7 + $0xc0] sm:$0xff]
    %v1229 = vld [vmem:[%s7 + $0xc8] sm:$0xff]
    %v1230 = vld [vmem:[%s7 + $0xd0] sm:$0xff]
    %v1231 = vld [vmem:[%s7 + $0xd8] sm:$0xff]
    %v1232 = vld [vmem:[%s7 + $0xe0] sm:$0xff]
    %v1233 = vld [vmem:[%s7 + $0xe8] sm:$0xff]
    %v1234 = vld [vmem:[%s7 + $0xf0] sm:$0xff]
    %v1235 = vld [vmem:[%s7 + $0xf8] sm:$0xff]
    %v1236 = vld [vmem:[%s7 + $0x100] sm:$0xff]
    %v1237 = vld [vmem:[%s7 + $0x108] sm:$0xff]
    %v1238 = vld [vmem:[%s7 + $0x110] sm:$0xff]
    %v1239 = vld [vmem:[%s7 + $0x118] sm:$0xff]
    %v1240 = vld [vmem:[%s7 + $0x120] sm:$0xff]
    %v1241 = vld [vmem:[%s7 + $0x128] sm:$0xff]
    %v1242 = vld [vmem:[%s7 + $0x130] sm:$0xff]
    %v1243 = vld [vmem:[%s7 + $0x138] sm:$0xff]
    %v1245 = vsel %vm99, %v1199, 0
    %v1248 = vsel %vm99, %v1201, 0
    %v1251 = vsel %vm99, %v1203, 0
    %1253 = vmatprep.subr.mxu0 %v1205
    %1254 = vmatpush1.msra.mxu0 %v1204
    %1255 = vmatprep.subr.mxu0 %v1207
    %1256 = vmatpush1.msra.mxu0 %v1206
    %1257 = vmatprep.subr.mxu0 %v1209
    %1258 = vmatpush1.msra.mxu0 %v1208
    %1259 = vmatprep.subr.mxu0 %v1211
    %1260 = vmatpush1.msra.mxu0 %v1210
    %1261 = vmatprep.subr.mxu0 %v1213
    %1262 = vmatpush1.msra.mxu0 %v1212
    %1263 = vmatprep.subr.mxu0 %v1215
    %1264 = vmatpush1.msra.mxu0 %v1214
    %1265 = vmatprep.subr.mxu0 %v1217
    %1266 = vmatpush1.msra.mxu0 %v1216
    %1267 = vmatprep.subr.mxu0 %v1219
    %1268 = vmatpush1.msra.mxu0 %v1218
    %1269 = vmatprep.subr.mxu0 %v1221
    %1270 = vmatpush1.msra.mxu0 %v1220
    %1271 = vmatprep.subr.mxu0 %v1223
    %1272 = vmatpush1.msra.mxu0 %v1222
    %1273 = vmatprep.subr.mxu0 %v1225
    %1274 = vmatpush1.msra.mxu0 %v1224
    %1275 = vmatprep.subr.mxu0 %v1227
    %1276 = vmatpush1.msra.mxu0 %v1226
    %1277 = vmatprep.subr.mxu0 %v1229
    %1278 = vmatpush1.msra.mxu0 %v1228
    %1279 = vmatprep.subr.mxu0 %v1231
    %1280 = vmatpush1.msra.mxu0 %v1230
    %1281 = vmatprep.subr.mxu0 %v1233
    %1282 = vmatpush1.msra.mxu0 %v1232
    %1283 = vmatprep.subr.mxu0 %v1235
    %1284 = vmatpush1.msra.mxu0 %v1234
    %1285 = vmatprep.subr.mxu0 %v1237
    %1286 = vmatpush1.msra.mxu0 %v1236
    %1287 = vmatprep.subr.mxu0 %v1239
    %1288 = vmatpush1.msra.mxu0 %v1238
    %1289 = vmatprep.subr.mxu0 %v1241
    %1290 = vmatpush1.msra.mxu0 %v1240
    %1291 = vmatprep.subr.mxu0 %v1243
    %1292 = vmatpush1.msra.mxu0 %v1242
    %1293 = vmatprep.subr.mxu0 0.0
    %1294 = vmatpush1.msra.mxu0 0.0
    %1295 = vmatprep.subr.mxu0 0.0
    %1296 = vmatpush1.msra.mxu0 0.0
    %1297 = vmatprep.subr.mxu0 0.0
    %1298 = vmatpush1.msra.mxu0 0.0
    %1299 = vmatprep.subr.mxu0 0.0
    %1300 = vmatpush1.msra.mxu0 0.0
    %1301 = vmatprep.subr.mxu0 0.0
    %1302 = vmatpush1.msra.mxu0 0.0
    %1303 = vmatprep.subr.mxu0 0.0
    %1304 = vmatpush1.msra.mxu0 0.0
    %1305 = vmatprep.subr.mxu0 0.0
    %1306 = vmatpush1.msra.mxu0 0.0
    %1307 = vmatprep.subr.mxu0 0.0
    %1308 = vmatpush1.msra.mxu0 0.0
    %1309 = vmatprep.subr.mxu0 0.0
    %1310 = vmatpush1.msra.mxu0 0.0
    %1311 = vmatprep.subr.mxu0 0.0
    %1312 = vmatpush1.msra.mxu0 0.0
    %1313 = vmatprep.subr.mxu0 0.0
    %1314 = vmatpush1.msra.mxu0 0.0
    %1315 = vmatprep.subr.mxu0 0.0
    %1316 = vmatpush1.msra.mxu0 0.0
    %1317 = vmatprep.mubr.f32.mxu0 %v1245
    %1318 = vmatmul.mubr.f32.gmra.mrb[0].mxu0 %v1198
    %v1319 = vpop.f32.mrb[0].mxu0
    %v1320 = vadd.f32 0.0, %v1319
    %v1321 = vpop.f32.mrb[0].mxu0
    %v1322 = vadd.f32 0.0, %v1321
    %1323 = vmatprep.mubr.f32.mxu0 %v1248
    %1324 = vmatmul.mubr.f32.gmra.mrb[0].mxu0 %v1200
    %v1325 = vpop.f32.mrb[0].mxu0
    %v1326 = vadd.f32 0.0, %v1325
    %v1327 = vpop.f32.mrb[0].mxu0
    %v1328 = vadd.f32 0.0, %v1327
    %1329 = vmatprep.mubr.f32.mxu0 %v1251
    %1330 = vmatmul.mubr.f32.gmra.mrb[0].mxu0 %v1202
    %v1331 = vpop.f32.mrb[0].mxu0
    %v1332 = vadd.f32 0.0, %v1331
    %v1333 = vpop.f32.mrb[0].mxu0
    %v1334 = vadd.f32 0.0, %v1333
    %1335 = vdwg.mxu0
    %v1336 = vmax.f32 %v1320, %v1322
    %v1337 = vmax.f32 %v1326, %v1328
    %v1338 = vmax.f32 %v1332, %v1334
    %v1339 = vld [vmem:[%s8] sm:$0xff]
    %v1340 = vld [vmem:[%s8 + $0x8] sm:$0xff]
    %v1341 = vld [vmem:[%s8 + $0x10] sm:$0xff]
    %v1342 = vld [vmem:[%s8 + $0x18] sm:$0xff]
    %v1343 = vld [vmem:[%s8 + $0x20] sm:$0xff]
    %v1344 = vld [vmem:[%s8 + $0x28] sm:$0xff]
    %v1345 = vld [vmem:[%s8 + $0x30] sm:$0xff]
    %v1346 = vld [vmem:[%s8 + $0x38] sm:$0xff]
    %v1347 = vld [vmem:[%s8 + $0x40] sm:$0xff]
    %v1348 = vld [vmem:[%s8 + $0x48] sm:$0xff]
    %vm1349 = vcmask 195584
    %v1351 = vsel %vm1349, %v1339, 0
    %v1354 = vsel %vm1349, %v1340, 0
    %v1357 = vsel %vm1349, %v1341, 0
    %v1360 = vsel %vm1349, %v1342, 0
    %v1363 = vsel %vm1349, %v1343, 0
    %v1366 = vsel %vm1349, %v1344, 0
    %v1369 = vsel %vm1349, %v1345, 0
    %v1372 = vsel %vm1349, %v1346, 0
    %v1375 = vsel %vm1349, %v1347, 0
    %v1378 = vsel %vm1349, %v1348, 0
    %1380 = vmatprep.subr.mxu0 0.0
    %1381 = vmatpush1.msra.mxu0 %v1336
    %1382 = vmatprep.subr.mxu0 0.0
    %1383 = vmatpush1.msra.mxu0 %v1337
    %1384 = vmatprep.subr.mxu0 0.0
    %1385 = vmatpush1.msra.mxu0 %v1338
    %1386 = vmatprep.subr.mxu0 0.0
    %1387 = vmatpush1.msra.mxu0 0.0
    %1388 = vmatprep.subr.mxu0 0.0
    %1389 = vmatpush1.msra.mxu0 0.0
    %1390 = vmatprep.subr.mxu0 0.0
    %1391 = vmatpush1.msra.mxu0 0.0
    %1392 = vmatprep.subr.mxu0 0.0
    %1393 = vmatpush1.msra.mxu0 0.0
    %1394 = vmatprep.subr.mxu0 0.0
    %1395 = vmatpush1.msra.mxu0 0.0
    %1396 = vmatprep.subr.mxu0 0.0
    %1397 = vmatpush1.msra.mxu0 0.0
    %1398 = vmatprep.subr.mxu0 0.0
    %1399 = vmatpush1.msra.mxu0 0.0
    %1400 = vmatprep.subr.mxu0 0.0
    %1401 = vmatpush1.msra.mxu0 0.0
    %1402 = vmatprep.subr.mxu0 0.0
    %1403 = vmatpush1.msra.mxu0 0.0
    %1404 = vmatprep.subr.mxu0 0.0
    %1405 = vmatpush1.msra.mxu0 0.0
    %1406 = vmatprep.subr.mxu0 0.0
    %1407 = vmatpush1.msra.mxu0 0.0
    %1408 = vmatprep.subr.mxu0 0.0
    %1409 = vmatpush1.msra.mxu0 0.0
    %1410 = vmatprep.subr.mxu0 0.0
    %1411 = vmatpush1.msra.mxu0 0.0
    %1412 = vmatprep.subr.mxu0 0.0
    %1413 = vmatpush1.msra.mxu0 0.0
    %1414 = vmatprep.subr.mxu0 0.0
    %1415 = vmatpush1.msra.mxu0 0.0
    %1416 = vmatprep.subr.mxu0 0.0
    %1417 = vmatpush1.msra.mxu0 0.0
    %1418 = vmatprep.subr.mxu0 0.0
    %1419 = vmatpush1.msra.mxu0 0.0
    %1420 = vmatprep.subr.mxu0 0.0
    %1421 = vmatpush1.msra.mxu0 0.0
    %1422 = vmatprep.subr.mxu0 0.0
    %1423 = vmatpush1.msra.mxu0 0.0
    %1424 = vmatprep.subr.mxu0 0.0
    %1425 = vmatpush1.msra.mxu0 0.0
    %1426 = vmatprep.subr.mxu0 0.0
    %1427 = vmatpush1.msra.mxu0 0.0
    %1428 = vmatprep.subr.mxu0 0.0
    %1429 = vmatpush1.msra.mxu0 0.0
    %1430 = vmatprep.subr.mxu0 0.0
    %1431 = vmatpush1.msra.mxu0 0.0
    %1432 = vmatprep.subr.mxu0 0.0
    %1433 = vmatpush1.msra.mxu0 0.0
    %1434 = vmatprep.subr.mxu0 0.0
    %1435 = vmatpush1.msra.mxu0 0.0
    %1436 = vmatprep.subr.mxu0 0.0
    %1437 = vmatpush1.msra.mxu0 0.0
    %1438 = vmatprep.subr.mxu0 0.0
    %1439 = vmatpush1.msra.mxu0 0.0
    %1440 = vmatprep.subr.mxu0 0.0
    %1441 = vmatpush1.msra.mxu0 0.0
    %1442 = vmatprep.subr.mxu0 0.0
    %1443 = vmatpush1.msra.mxu0 0.0
    %1444 = vmatprep.mubr.f32.mxu0 0.0
    %1445 = vmatmul.mubr.f32.gmra.mrb[0].mxu0 %v1351
    %v1446 = vpop.f32.mrb[0].mxu0
    %v1447 = vadd.f32 0.0, %v1446
    %v1448 = vpop.f32.mrb[0].mxu0
    %1449 = vmatprep.mubr.f32.mxu0 0.0
    %1450 = vmatmul.mubr.f32.gmra.mrb[0].mxu0 %v1354
    %v1451 = vpop.f32.mrb[0].mxu0
    %v1452 = vadd.f32 0.0, %v1451
    %v1453 = vpop.f32.mrb[0].mxu0
    %1454 = vmatprep.mubr.f32.mxu0 0.0
    %1455 = vmatmul.mubr.f32.gmra.mrb[0].mxu0 %v1357
    %v1456 = vpop.f32.mrb[0].mxu0
    %v1457 = vadd.f32 0.0, %v1456
    %v1458 = vpop.f32.mrb[0].mxu0
    %1459 = vmatprep.mubr.f32.mxu0 0.0
    %1460 = vmatmul.mubr.f32.gmra.mrb[0].mxu0 %v1360
    %v1461 = vpop.f32.mrb[0].mxu0
    %v1462 = vadd.f32 0.0, %v1461
    %v1463 = vpop.f32.mrb[0].mxu0
    %1464 = vmatprep.mubr.f32.mxu0 0.0
    %1465 = vmatmul.mubr.f32.gmra.mrb[0].mxu0 %v1363
    %v1466 = vpop.f32.mrb[0].mxu0
    %v1467 = vadd.f32 0.0, %v1466
    %v1468 = vpop.f32.mrb[0].mxu0
    %1469 = vmatprep.mubr.f32.mxu0 0.0
    %1470 = vmatmul.mubr.f32.gmra.mrb[0].mxu0 %v1366
    %v1471 = vpop.f32.mrb[0].mxu0
    %v1472 = vadd.f32 0.0, %v1471
    %v1473 = vpop.f32.mrb[0].mxu0
    %1474 = vmatprep.mubr.f32.mxu0 0.0
    %1475 = vmatmul.mubr.f32.gmra.mrb[0].mxu0 %v1369
    %v1476 = vpop.f32.mrb[0].mxu0
    %v1477 = vadd.f32 0.0, %v1476
    %v1478 = vpop.f32.mrb[0].mxu0
    %1479 = vmatprep.mubr.f32.mxu0 0.0
    %1480 = vmatmul.mubr.f32.gmra.mrb[0].mxu0 %v1372
    %v1481 = vpop.f32.mrb[0].mxu0
    %v1482 = vadd.f32 0.0, %v1481
    %v1483 = vpop.f32.mrb[0].mxu0
    %1484 = vmatprep.mubr.f32.mxu0 0.0
    %1485 = vmatmul.mubr.f32.gmra.mrb[0].mxu0 %v1375
    %v1486 = vpop.f32.mrb[0].mxu0
    %v1487 = vadd.f32 0.0, %v1486
    %v1488 = vpop.f32.mrb[0].mxu0
    %1489 = vmatprep.mubr.f32.mxu0 0.0
    %1490 = vmatmul.mubr.f32.gmra.mrb[0].mxu0 %v1378
    %v1491 = vpop.f32.mrb[0].mxu0
    %v1492 = vadd.f32 0.0, %v1491
    %v1493 = vpop.f32.mrb[0].mxu0
    %1494 = vdwg.mxu0
    %v1495 = vmax.f32 %v1447, %v1472
    %v1496 = vmax.f32 %v1452, %v1477
    %v1497 = vmax.f32 %v1457, %v1482
    %v1498 = vmax.f32 %v1462, %v1487
    %v1499 = vmax.f32 %v1467, %v1492
    %v1500 = vmax.f32 %v1495, 0.0
    %v1501 = vmax.f32 %v1496, 0.0
    %v1502 = vmax.f32 %v1497, 0.0
    %v1503 = vmax.f32 %v1498, 0.0
    %v1504 = vmax.f32 %v1499, 0.0
    %v1505 = vld [vmem:[%s9] sm:$0xff]
    %v1506 = vld [vmem:[%s9 + $0x8] sm:$0xff]
    %v1507 = vld [vmem:[%s9 + $0x10] sm:$0xff]
    %v1508 = vld [vmem:[%s9 + $0x18] sm:$0xff]
    %v1509 = vld [vmem:[%s9 + $0x20] sm:$0xff]
    %v1510 = vld [vmem:[%s9 + $0x28] sm:$0xff]
    %v1511 = vld [vmem:[%s9 + $0x30] sm:$0xff]
    %v1512 = vld [vmem:[%s9 + $0x38] sm:$0xff]
    %v1513 = vld [vmem:[%s9 + $0x40] sm:$0xff]
    %v1514 = vld [vmem:[%s9 + $0x48] sm:$0xff]
    %v1515 = vld [vmem:[%s9 + $0x50] sm:$0xff]
    %v1516 = vld [vmem:[%s9 + $0x58] sm:$0xff]
    %v1517 = vld [vmem:[%s9 + $0x60] sm:$0xff]
    %v1518 = vld [vmem:[%s9 + $0x68] sm:$0xff]
    %v1519 = vld [vmem:[%s9 + $0x70] sm:$0xff]
    %v1520 = vld [vmem:[%s9 + $0x78] sm:$0xff]
    %s1521 = scalar_lea.vmem %s9, 128
    %v1522 = vld [vmem:[%s1521] sm:$0xff]
    %v1523 = vld [vmem:[%s1521 + $0x8] sm:$0xff]
    %v1524 = vld [vmem:[%s1521 + $0x10] sm:$0xff]
    %v1525 = vld [vmem:[%s1521 + $0x18] sm:$0xff]
    %v1526 = vld [vmem:[%s1521 + $0x20] sm:$0xff]
    %v1527 = vld [vmem:[%s1521 + $0x28] sm:$0xff]
    %v1528 = vld [vmem:[%s1521 + $0x30] sm:$0xff]
    %v1529 = vld [vmem:[%s1521 + $0x38] sm:$0xff]
    %v1530 = vld [vmem:[%s1521 + $0x40] sm:$0xff]
    %v1531 = vld [vmem:[%s1521 + $0x48] sm:$0xff]
    %v1532 = vld [vmem:[%s1521 + $0x50] sm:$0xff]
    %v1533 = vld [vmem:[%s1521 + $0x58] sm:$0xff]
    %v1534 = vld [vmem:[%s1521 + $0x60] sm:$0xff]
    %v1535 = vld [vmem:[%s1521 + $0x68] sm:$0xff]
    %v1536 = vld [vmem:[%s1521 + $0x70] sm:$0xff]
    %v1537 = vld [vmem:[%s1521 + $0x78] sm:$0xff]
    %1538 = vmatprep.subr.mxu0 0.0
    %1539 = vmatpush1.msra.mxu0 %v1522
    %1540 = vmatprep.subr.mxu0 0.0
    %1541 = vmatpush1.msra.mxu0 %v1523
    %1542 = vmatprep.subr.mxu0 0.0
    %1543 = vmatpush1.msra.mxu0 %v1524
    %1544 = vmatprep.subr.mxu0 0.0
    %1545 = vmatpush1.msra.mxu0 %v1525
    %1546 = vmatprep.subr.mxu0 0.0
    %1547 = vmatpush1.msra.mxu0 %v1526
    %1548 = vmatprep.subr.mxu0 0.0
    %1549 = vmatpush1.msra.mxu0 %v1527
    %1550 = vmatprep.subr.mxu0 0.0
    %1551 = vmatpush1.msra.mxu0 %v1528
    %1552 = vmatprep.subr.mxu0 0.0
    %1553 = vmatpush1.msra.mxu0 %v1529
    %1554 = vmatprep.subr.mxu0 0.0
    %1555 = vmatpush1.msra.mxu0 %v1530
    %1556 = vmatprep.subr.mxu0 0.0
    %1557 = vmatpush1.msra.mxu0 %v1531
    %1558 = vmatprep.subr.mxu0 0.0
    %1559 = vmatpush1.msra.mxu0 %v1532
    %1560 = vmatprep.subr.mxu0 0.0
    %1561 = vmatpush1.msra.mxu0 %v1533
    %1562 = vmatprep.subr.mxu0 0.0
    %1563 = vmatpush1.msra.mxu0 %v1534
    %1564 = vmatprep.subr.mxu0 0.0
    %1565 = vmatpush1.msra.mxu0 %v1535
    %1566 = vmatprep.subr.mxu0 0.0
    %1567 = vmatpush1.msra.mxu0 %v1536
    %1568 = vmatprep.subr.mxu0 0.0
    %1569 = vmatpush1.msra.mxu0 %v1537
    %1570 = vmatprep.subr.mxu0 0.0
    %1571 = vmatpush1.msra.mxu0 0.0
    %1572 = vmatprep.subr.mxu0 0.0
    %1573 = vmatpush1.msra.mxu0 0.0
    %1574 = vmatprep.subr.mxu0 0.0
    %1575 = vmatpush1.msra.mxu0 0.0
    %1576 = vmatprep.subr.mxu0 0.0
    %1577 = vmatpush1.msra.mxu0 0.0
    %1578 = vmatprep.subr.mxu0 0.0
    %1579 = vmatpush1.msra.mxu0 0.0
    %1580 = vmatprep.subr.mxu0 0.0
    %1581 = vmatpush1.msra.mxu0 0.0
    %1582 = vmatprep.subr.mxu0 0.0
    %1583 = vmatpush1.msra.mxu0 0.0
    %1584 = vmatprep.subr.mxu0 0.0
    %1585 = vmatpush1.msra.mxu0 0.0
    %1586 = vmatprep.subr.mxu0 0.0
    %1587 = vmatpush1.msra.mxu0 0.0
    %1588 = vmatprep.subr.mxu0 0.0
    %1589 = vmatpush1.msra.mxu0 0.0
    %1590 = vmatprep.subr.mxu0 0.0
    %1591 = vmatpush1.msra.mxu0 0.0
    %1592 = vmatprep.subr.mxu0 0.0
    %1593 = vmatpush1.msra.mxu0 0.0
    %1594 = vmatprep.subr.mxu0 0.0
    %1595 = vmatpush1.msra.mxu0 0.0
    %1596 = vmatprep.subr.mxu0 0.0
    %1597 = vmatpush1.msra.mxu0 0.0
    %1598 = vmatprep.subr.mxu0 0.0
    %1599 = vmatpush1.msra.mxu0 0.0
    %1600 = vmatprep.subr.mxu0 0.0
    %1601 = vmatpush1.msra.mxu0 0.0
    %1602 = vmatprep.mubr.f32.mxu0 0.0
    %1603 = vmatmul.mubr.f32.gmra.mrb[0].mxu0 %v1501
    %v1604 = vpop.f32.mrb[0].mxu0
    %v1605 = vadd.f32 0.0, %v1604
    %v1606 = vpop.f32.mrb[0].mxu0
    %1607 = vdwg.mxu0
    %1608 = vmatprep.subr.mxu0 0.0
    %1609 = vmatpush1.msra.mxu0 %v1505
    %1610 = vmatprep.subr.mxu0 0.0
    %1611 = vmatpush1.msra.mxu0 %v1506
    %1612 = vmatprep.subr.mxu0 0.0
    %1613 = vmatpush1.msra.mxu0 %v1507
    %1614 = vmatprep.subr.mxu0 0.0
    %1615 = vmatpush1.msra.mxu0 %v1508
    %1616 = vmatprep.subr.mxu0 0.0
    %1617 = vmatpush1.msra.mxu0 %v1509
    %1618 = vmatprep.subr.mxu0 0.0
    %1619 = vmatpush1.msra.mxu0 %v1510
    %1620 = vmatprep.subr.mxu0 0.0
    %1621 = vmatpush1.msra.mxu0 %v1511
    %1622 = vmatprep.subr.mxu0 0.0
    %1623 = vmatpush1.msra.mxu0 %v1512
    %1624 = vmatprep.subr.mxu0 0.0
    %1625 = vmatpush1.msra.mxu0 %v1513
    %1626 = vmatprep.subr.mxu0 0.0
    %1627 = vmatpush1.msra.mxu0 %v1514
    %1628 = vmatprep.subr.mxu0 0.0
    %1629 = vmatpush1.msra.mxu0 %v1515
    %1630 = vmatprep.subr.mxu0 0.0
    %1631 = vmatpush1.msra.mxu0 %v1516
    %1632 = vmatprep.subr.mxu0 0.0
    %1633 = vmatpush1.msra.mxu0 %v1517
    %1634 = vmatprep.subr.mxu0 0.0
    %1635 = vmatpush1.msra.mxu0 %v1518
    %1636 = vmatprep.subr.mxu0 0.0
    %1637 = vmatpush1.msra.mxu0 %v1519
    %1638 = vmatprep.subr.mxu0 0.0
    %1639 = vmatpush1.msra.mxu0 %v1520
    %1640 = vmatprep.subr.mxu0 0.0
    %1641 = vmatpush1.msra.mxu0 0.0
    %1642 = vmatprep.subr.mxu0 0.0
    %1643 = vmatpush1.msra.mxu0 0.0
    %1644 = vmatprep.subr.mxu0 0.0
    %1645 = vmatpush1.msra.mxu0 0.0
    %1646 = vmatprep.subr.mxu0 0.0
    %1647 = vmatpush1.msra.mxu0 0.0
    %1648 = vmatprep.subr.mxu0 0.0
    %1649 = vmatpush1.msra.mxu0 0.0
    %1650 = vmatprep.subr.mxu0 0.0
    %1651 = vmatpush1.msra.mxu0 0.0
    %1652 = vmatprep.subr.mxu0 0.0
    %1653 = vmatpush1.msra.mxu0 0.0
    %1654 = vmatprep.subr.mxu0 0.0
    %1655 = vmatpush1.msra.mxu0 0.0
    %1656 = vmatprep.subr.mxu0 0.0
    %1657 = vmatpush1.msra.mxu0 0.0
    %1658 = vmatprep.subr.mxu0 0.0
    %1659 = vmatpush1.msra.mxu0 0.0
    %1660 = vmatprep.subr.mxu0 0.0
    %1661 = vmatpush1.msra.mxu0 0.0
    %1662 = vmatprep.subr.mxu0 0.0
    %1663 = vmatpush1.msra.mxu0 0.0
    %1664 = vmatprep.subr.mxu0 0.0
    %1665 = vmatpush1.msra.mxu0 0.0
    %1666 = vmatprep.subr.mxu0 0.0
    %1667 = vmatpush1.msra.mxu0 0.0
    %1668 = vmatprep.subr.mxu0 0.0
    %1669 = vmatpush1.msra.mxu0 0.0
    %1670 = vmatprep.subr.mxu0 0.0
    %1671 = vmatpush1.msra.mxu0 0.0
    %1672 = vmatprep.mubr.f32.mxu0 0.0
    %1673 = vmatmul.mubr.f32.gmra.mrb[0].mxu0 %v1500
    %v1674 = vpop.f32.mrb[0].mxu0
    %v1675 = vadd.f32 %v1605, %v1674
    %v1676 = vpop.f32.mrb[0].mxu0
    %1677 = vdwg.mxu0
    %s1678 = scalar_lea.vmem %s9, 256
    %v1679 = vld [vmem:[%s1678] sm:$0xff]
    %v1680 = vld [vmem:[%s1678 + $0x8] sm:$0xff]
    %v1681 = vld [vmem:[%s1678 + $0x10] sm:$0xff]
    %v1682 = vld [vmem:[%s1678 + $0x18] sm:$0xff]
    %v1683 = vld [vmem:[%s1678 + $0x20] sm:$0xff]
    %v1684 = vld [vmem:[%s1678 + $0x28] sm:$0xff]
    %v1685 = vld [vmem:[%s1678 + $0x30] sm:$0xff]
    %v1686 = vld [vmem:[%s1678 + $0x38] sm:$0xff]
    %v1687 = vld [vmem:[%s1678 + $0x40] sm:$0xff]
    %v1688 = vld [vmem:[%s1678 + $0x48] sm:$0xff]
    %v1689 = vld [vmem:[%s1678 + $0x50] sm:$0xff]
    %v1690 = vld [vmem:[%s1678 + $0x58] sm:$0xff]
    %v1691 = vld [vmem:[%s1678 + $0x60] sm:$0xff]
    %v1692 = vld [vmem:[%s1678 + $0x68] sm:$0xff]
    %v1693 = vld [vmem:[%s1678 + $0x70] sm:$0xff]
    %v1694 = vld [vmem:[%s1678 + $0x78] sm:$0xff]
    %1695 = vmatprep.subr.mxu0 0.0
    %1696 = vmatpush1.msra.mxu0 %v1679
    %1697 = vmatprep.subr.mxu0 0.0
    %1698 = vmatpush1.msra.mxu0 %v1680
    %1699 = vmatprep.subr.mxu0 0.0
    %1700 = vmatpush1.msra.mxu0 %v1681
    %1701 = vmatprep.subr.mxu0 0.0
    %1702 = vmatpush1.msra.mxu0 %v1682
    %1703 = vmatprep.subr.mxu0 0.0
    %1704 = vmatpush1.msra.mxu0 %v1683
    %1705 = vmatprep.subr.mxu0 0.0
    %1706 = vmatpush1.msra.mxu0 %v1684
    %1707 = vmatprep.subr.mxu0 0.0
    %1708 = vmatpush1.msra.mxu0 %v1685
    %1709 = vmatprep.subr.mxu0 0.0
    %1710 = vmatpush1.msra.mxu0 %v1686
    %1711 = vmatprep.subr.mxu0 0.0
    %1712 = vmatpush1.msra.mxu0 %v1687
    %1713 = vmatprep.subr.mxu0 0.0
    %1714 = vmatpush1.msra.mxu0 %v1688
    %1715 = vmatprep.subr.mxu0 0.0
    %1716 = vmatpush1.msra.mxu0 %v1689
    %1717 = vmatprep.subr.mxu0 0.0
    %1718 = vmatpush1.msra.mxu0 %v1690
    %1719 = vmatprep.subr.mxu0 0.0
    %1720 = vmatpush1.msra.mxu0 %v1691
    %1721 = vmatprep.subr.mxu0 0.0
    %1722 = vmatpush1.msra.mxu0 %v1692
    %1723 = vmatprep.subr.mxu0 0.0
    %1724 = vmatpush1.msra.mxu0 %v1693
    %1725 = vmatprep.subr.mxu0 0.0
    %1726 = vmatpush1.msra.mxu0 %v1694
    %1727 = vmatprep.subr.mxu0 0.0
    %1728 = vmatpush1.msra.mxu0 0.0
    %1729 = vmatprep.subr.mxu0 0.0
    %1730 = vmatpush1.msra.mxu0 0.0
    %1731 = vmatprep.subr.mxu0 0.0
    %1732 = vmatpush1.msra.mxu0 0.0
    %1733 = vmatprep.subr.mxu0 0.0
    %1734 = vmatpush1.msra.mxu0 0.0
    %1735 = vmatprep.subr.mxu0 0.0
    %1736 = vmatpush1.msra.mxu0 0.0
    %1737 = vmatprep.subr.mxu0 0.0
    %1738 = vmatpush1.msra.mxu0 0.0
    %1739 = vmatprep.subr.mxu0 0.0
    %1740 = vmatpush1.msra.mxu0 0.0
    %1741 = vmatprep.subr.mxu0 0.0
    %1742 = vmatpush1.msra.mxu0 0.0
    %1743 = vmatprep.subr.mxu0 0.0
    %1744 = vmatpush1.msra.mxu0 0.0
    %1745 = vmatprep.subr.mxu0 0.0
    %1746 = vmatpush1.msra.mxu0 0.0
    %1747 = vmatprep.subr.mxu0 0.0
    %1748 = vmatpush1.msra.mxu0 0.0
    %1749 = vmatprep.subr.mxu0 0.0
    %1750 = vmatpush1.msra.mxu0 0.0
    %1751 = vmatprep.subr.mxu0 0.0
    %1752 = vmatpush1.msra.mxu0 0.0
    %1753 = vmatprep.subr.mxu0 0.0
    %1754 = vmatpush1.msra.mxu0 0.0
    %1755 = vmatprep.subr.mxu0 0.0
    %1756 = vmatpush1.msra.mxu0 0.0
    %1757 = vmatprep.subr.mxu0 0.0
    %1758 = vmatpush1.msra.mxu0 0.0
    %1759 = vmatprep.mubr.f32.mxu0 0.0
    %1760 = vmatmul.mubr.f32.gmra.mrb[0].mxu0 %v1502
    %v1761 = vpop.f32.mrb[0].mxu0
    %v1762 = vadd.f32 0.0, %v1761
    %v1763 = vpop.f32.mrb[0].mxu0
    %1764 = vdwg.mxu0
    %v1765 = vadd.f32 %v1675, %v1762
    %s1766 = scalar_lea.vmem %s9, 384
    %v1767 = vld [vmem:[%s1766] sm:$0xff]
    %v1768 = vld [vmem:[%s1766 + $0x8] sm:$0xff]
    %v1769 = vld [vmem:[%s1766 + $0x10] sm:$0xff]
    %v1770 = vld [vmem:[%s1766 + $0x18] sm:$0xff]
    %v1771 = vld [vmem:[%s1766 + $0x20] sm:$0xff]
    %v1772 = vld [vmem:[%s1766 + $0x28] sm:$0xff]
    %v1773 = vld [vmem:[%s1766 + $0x30] sm:$0xff]
    %v1774 = vld [vmem:[%s1766 + $0x38] sm:$0xff]
    %v1775 = vld [vmem:[%s1766 + $0x40] sm:$0xff]
    %v1776 = vld [vmem:[%s1766 + $0x48] sm:$0xff]
    %v1777 = vld [vmem:[%s1766 + $0x50] sm:$0xff]
    %v1778 = vld [vmem:[%s1766 + $0x58] sm:$0xff]
    %v1779 = vld [vmem:[%s1766 + $0x60] sm:$0xff]
    %v1780 = vld [vmem:[%s1766 + $0x68] sm:$0xff]
    %v1781 = vld [vmem:[%s1766 + $0x70] sm:$0xff]
    %v1782 = vld [vmem:[%s1766 + $0x78] sm:$0xff]
    %1783 = vmatprep.subr.mxu0 0.0
    %1784 = vmatpush1.msra.mxu0 %v1767
    %1785 = vmatprep.subr.mxu0 0.0
    %1786 = vmatpush1.msra.mxu0 %v1768
    %1787 = vmatprep.subr.mxu0 0.0
    %1788 = vmatpush1.msra.mxu0 %v1769
    %1789 = vmatprep.subr.mxu0 0.0
    %1790 = vmatpush1.msra.mxu0 %v1770
    %1791 = vmatprep.subr.mxu0 0.0
    %1792 = vmatpush1.msra.mxu0 %v1771
    %1793 = vmatprep.subr.mxu0 0.0
    %1794 = vmatpush1.msra.mxu0 %v1772
    %1795 = vmatprep.subr.mxu0 0.0
    %1796 = vmatpush1.msra.mxu0 %v1773
    %1797 = vmatprep.subr.mxu0 0.0
    %1798 = vmatpush1.msra.mxu0 %v1774
    %1799 = vmatprep.subr.mxu0 0.0
    %1800 = vmatpush1.msra.mxu0 %v1775
    %1801 = vmatprep.subr.mxu0 0.0
    %1802 = vmatpush1.msra.mxu0 %v1776
    %1803 = vmatprep.subr.mxu0 0.0
    %1804 = vmatpush1.msra.mxu0 %v1777
    %1805 = vmatprep.subr.mxu0 0.0
    %1806 = vmatpush1.msra.mxu0 %v1778
    %1807 = vmatprep.subr.mxu0 0.0
    %1808 = vmatpush1.msra.mxu0 %v1779
    %1809 = vmatprep.subr.mxu0 0.0
    %1810 = vmatpush1.msra.mxu0 %v1780
    %1811 = vmatprep.subr.mxu0 0.0
    %1812 = vmatpush1.msra.mxu0 %v1781
    %1813 = vmatprep.subr.mxu0 0.0
    %1814 = vmatpush1.msra.mxu0 %v1782
    %1815 = vmatprep.subr.mxu0 0.0
    %1816 = vmatpush1.msra.mxu0 0.0
    %1817 = vmatprep.subr.mxu0 0.0
    %1818 = vmatpush1.msra.mxu0 0.0
    %1819 = vmatprep.subr.mxu0 0.0
    %1820 = vmatpush1.msra.mxu0 0.0
    %1821 = vmatprep.subr.mxu0 0.0
    %1822 = vmatpush1.msra.mxu0 0.0
    %1823 = vmatprep.subr.mxu0 0.0
    %1824 = vmatpush1.msra.mxu0 0.0
    %1825 = vmatprep.subr.mxu0 0.0
    %1826 = vmatpush1.msra.mxu0 0.0
    %1827 = vmatprep.subr.mxu0 0.0
    %1828 = vmatpush1.msra.mxu0 0.0
    %1829 = vmatprep.subr.mxu0 0.0
    %1830 = vmatpush1.msra.mxu0 0.0
    %1831 = vmatprep.subr.mxu0 0.0
    %1832 = vmatpush1.msra.mxu0 0.0
    %1833 = vmatprep.subr.mxu0 0.0
    %1834 = vmatpush1.msra.mxu0 0.0
    %1835 = vmatprep.subr.mxu0 0.0
    %1836 = vmatpush1.msra.mxu0 0.0
    %1837 = vmatprep.subr.mxu0 0.0
    %1838 = vmatpush1.msra.mxu0 0.0
    %1839 = vmatprep.subr.mxu0 0.0
    %1840 = vmatpush1.msra.mxu0 0.0
    %1841 = vmatprep.subr.mxu0 0.0
    %1842 = vmatpush1.msra.mxu0 0.0
    %1843 = vmatprep.subr.mxu0 0.0
    %1844 = vmatpush1.msra.mxu0 0.0
    %1845 = vmatprep.subr.mxu0 0.0
    %1846 = vmatpush1.msra.mxu0 0.0
    %1847 = vmatprep.mubr.f32.mxu0 0.0
    %1848 = vmatmul.mubr.f32.gmra.mrb[0].mxu0 %v1503
    %v1849 = vpop.f32.mrb[0].mxu0
    %v1850 = vadd.f32 0.0, %v1849
    %v1851 = vpop.f32.mrb[0].mxu0
    %1852 = vdwg.mxu0
    %v1853 = vadd.f32 %v1765, %v1850
    %s1854 = scalar_lea.vmem %s9, 512
    %v1855 = vld [vmem:[%s1854] sm:$0xff]
    %v1856 = vld [vmem:[%s1854 + $0x8] sm:$0xff]
    %v1857 = vld [vmem:[%s1854 + $0x10] sm:$0xff]
    %v1858 = vld [vmem:[%s1854 + $0x18] sm:$0xff]
    %v1859 = vld [vmem:[%s1854 + $0x20] sm:$0xff]
    %v1860 = vld [vmem:[%s1854 + $0x28] sm:$0xff]
    %v1861 = vld [vmem:[%s1854 + $0x30] sm:$0xff]
    %v1862 = vld [vmem:[%s1854 + $0x38] sm:$0xff]
    %v1863 = vld [vmem:[%s1854 + $0x40] sm:$0xff]
    %v1864 = vld [vmem:[%s1854 + $0x48] sm:$0xff]
    %v1865 = vld [vmem:[%s1854 + $0x50] sm:$0xff]
    %v1866 = vld [vmem:[%s1854 + $0x58] sm:$0xff]
    %v1867 = vld [vmem:[%s1854 + $0x60] sm:$0xff]
    %v1868 = vld [vmem:[%s1854 + $0x68] sm:$0xff]
    %v1869 = vld [vmem:[%s1854 + $0x70] sm:$0xff]
    %v1870 = vld [vmem:[%s1854 + $0x78] sm:$0xff]
    %1871 = vmatprep.subr.mxu0 0.0
    %1872 = vmatpush1.msra.mxu0 %v1855
    %1873 = vmatprep.subr.mxu0 0.0
    %1874 = vmatpush1.msra.mxu0 %v1856
    %1875 = vmatprep.subr.mxu0 0.0
    %1876 = vmatpush1.msra.mxu0 %v1857
    %1877 = vmatprep.subr.mxu0 0.0
    %1878 = vmatpush1.msra.mxu0 %v1858
    %1879 = vmatprep.subr.mxu0 0.0
    %1880 = vmatpush1.msra.mxu0 %v1859
    %1881 = vmatprep.subr.mxu0 0.0
    %1882 = vmatpush1.msra.mxu0 %v1860
    %1883 = vmatprep.subr.mxu0 0.0
    %1884 = vmatpush1.msra.mxu0 %v1861
    %1885 = vmatprep.subr.mxu0 0.0
    %1886 = vmatpush1.msra.mxu0 %v1862
    %1887 = vmatprep.subr.mxu0 0.0
    %1888 = vmatpush1.msra.mxu0 %v1863
    %1889 = vmatprep.subr.mxu0 0.0
    %1890 = vmatpush1.msra.mxu0 %v1864
    %1891 = vmatprep.subr.mxu0 0.0
    %1892 = vmatpush1.msra.mxu0 %v1865
    %1893 = vmatprep.subr.mxu0 0.0
    %1894 = vmatpush1.msra.mxu0 %v1866
    %1895 = vmatprep.subr.mxu0 0.0
    %1896 = vmatpush1.msra.mxu0 %v1867
    %1897 = vmatprep.subr.mxu0 0.0
    %1898 = vmatpush1.msra.mxu0 %v1868
    %1899 = vmatprep.subr.mxu0 0.0
    %1900 = vmatpush1.msra.mxu0 %v1869
    %1901 = vmatprep.subr.mxu0 0.0
    %1902 = vmatpush1.msra.mxu0 %v1870
    %1903 = vmatprep.subr.mxu0 0.0
    %1904 = vmatpush1.msra.mxu0 0.0
    %1905 = vmatprep.subr.mxu0 0.0
    %1906 = vmatpush1.msra.mxu0 0.0
    %1907 = vmatprep.subr.mxu0 0.0
    %1908 = vmatpush1.msra.mxu0 0.0
    %1909 = vmatprep.subr.mxu0 0.0
    %1910 = vmatpush1.msra.mxu0 0.0
    %1911 = vmatprep.subr.mxu0 0.0
    %1912 = vmatpush1.msra.mxu0 0.0
    %1913 = vmatprep.subr.mxu0 0.0
    %1914 = vmatpush1.msra.mxu0 0.0
    %1915 = vmatprep.subr.mxu0 0.0
    %1916 = vmatpush1.msra.mxu0 0.0
    %1917 = vmatprep.subr.mxu0 0.0
    %1918 = vmatpush1.msra.mxu0 0.0
    %1919 = vmatprep.subr.mxu0 0.0
    %1920 = vmatpush1.msra.mxu0 0.0
    %1921 = vmatprep.subr.mxu0 0.0
    %1922 = vmatpush1.msra.mxu0 0.0
    %1923 = vmatprep.subr.mxu0 0.0
    %1924 = vmatpush1.msra.mxu0 0.0
    %1925 = vmatprep.subr.mxu0 0.0
    %1926 = vmatpush1.msra.mxu0 0.0
    %1927 = vmatprep.subr.mxu0 0.0
    %1928 = vmatpush1.msra.mxu0 0.0
    %1929 = vmatprep.subr.mxu0 0.0
    %1930 = vmatpush1.msra.mxu0 0.0
    %1931 = vmatprep.subr.mxu0 0.0
    %1932 = vmatpush1.msra.mxu0 0.0
    %1933 = vmatprep.subr.mxu0 0.0
    %1934 = vmatpush1.msra.mxu0 0.0
    %1935 = vmatprep.mubr.f32.mxu0 0.0
    %1936 = vmatmul.mubr.f32.gmra.mrb[0].mxu0 %v1504
    %v1937 = vpop.f32.mrb[0].mxu0
    %v1938 = vadd.f32 0.0, %v1937
    %v1939 = vpop.f32.mrb[0].mxu0
    %1940 = vdwg.mxu0
    %v1941 = vadd.f32 %v1853, %v1938
    %v1942 = vld [vmem:[%s10] sm:$0x1]
    %v1944 = vlaneseq
    %v1945 = vshrl.u32 %v1944, 7
    %v1946 = vsub.s32 0, %v1945
    %v1947 = vrot.slane %v1942, %v1946
    %v1949 = vadd.f32 %v1941, %v1947
    %v1950 = vmax.f32 %v1949, 0.0
    %v1951 = vld [vmem:[%s11] sm:$0xff]
    %v1952 = vld [vmem:[%s11 + $0x8] sm:$0xff]
    %v1953 = vld [vmem:[%s11 + $0x10] sm:$0xff]
    %v1954 = vld [vmem:[%s11 + $0x18] sm:$0xff]
    %v1955 = vld [vmem:[%s11 + $0x20] sm:$0xff]
    %v1956 = vld [vmem:[%s11 + $0x28] sm:$0xff]
    %v1957 = vld [vmem:[%s11 + $0x30] sm:$0xff]
    %v1958 = vld [vmem:[%s11 + $0x38] sm:$0xff]
    %v1959 = vld [vmem:[%s11 + $0x40] sm:$0xff]
    %v1960 = vld [vmem:[%s11 + $0x48] sm:$0xff]
    %v1961 = vld [vmem:[%s11 + $0x50] sm:$0xff]
    %v1962 = vld [vmem:[%s11 + $0x58] sm:$0xff]
    %v1963 = vld [vmem:[%s11 + $0x60] sm:$0xff]
    %v1964 = vld [vmem:[%s11 + $0x68] sm:$0xff]
    %v1965 = vld [vmem:[%s11 + $0x70] sm:$0xff]
    %v1966 = vld [vmem:[%s12] sm:$0x1]
    %v1968 = vlaneseq
    %v1969 = vshrl.u32 %v1968, 7
    %v1970 = vsub.s32 0, %v1969
    %v1971 = vrot.slane %v1966, %v1970
    %vm1973 = vcmask 982016
    %v1975 = vsel %vm1973, %v1950, 0
    %1977 = vmatprep.subr.mxu0 0.0
    %1978 = vmatpush1.msra.mxu0 %v1951
    %1979 = vmatprep.subr.mxu0 0.0
    %1980 = vmatpush1.msra.mxu0 %v1952
    %1981 = vmatprep.subr.mxu0 0.0
    %1982 = vmatpush1.msra.mxu0 %v1953
    %1983 = vmatprep.subr.mxu0 0.0
    %1984 = vmatpush1.msra.mxu0 %v1954
    %1985 = vmatprep.subr.mxu0 0.0
    %1986 = vmatpush1.msra.mxu0 %v1955
    %1987 = vmatprep.subr.mxu0 0.0
    %1988 = vmatpush1.msra.mxu0 %v1956
    %1989 = vmatprep.subr.mxu0 0.0
    %1990 = vmatpush1.msra.mxu0 %v1957
    %1991 = vmatprep.subr.mxu0 0.0
    %1992 = vmatpush1.msra.mxu0 %v1958
    %1993 = vmatprep.subr.mxu0 0.0
    %1994 = vmatpush1.msra.mxu0 %v1959
    %1995 = vmatprep.subr.mxu0 0.0
    %1996 = vmatpush1.msra.mxu0 %v1960
    %1997 = vmatprep.subr.mxu0 0.0
    %1998 = vmatpush1.msra.mxu0 %v1961
    %1999 = vmatprep.subr.mxu0 0.0
    %2000 = vmatpush1.msra.mxu0 %v1962
    %2001 = vmatprep.subr.mxu0 0.0
    %2002 = vmatpush1.msra.mxu0 %v1963
    %2003 = vmatprep.subr.mxu0 0.0
    %2004 = vmatpush1.msra.mxu0 %v1964
    %2005 = vmatprep.subr.mxu0 0.0
    %2006 = vmatpush1.msra.mxu0 %v1965
    %2007 = vmatprep.subr.mxu0 0.0
    %2008 = vmatpush1.msra.mxu0 0.0
    %2009 = vmatprep.subr.mxu0 0.0
    %2010 = vmatpush1.msra.mxu0 0.0
    %2011 = vmatprep.subr.mxu0 0.0
    %2012 = vmatpush1.msra.mxu0 0.0
    %2013 = vmatprep.subr.mxu0 0.0
    %2014 = vmatpush1.msra.mxu0 0.0
    %2015 = vmatprep.subr.mxu0 0.0
    %2016 = vmatpush1.msra.mxu0 0.0
    %2017 = vmatprep.subr.mxu0 0.0
    %2018 = vmatpush1.msra.mxu0 0.0
    %2019 = vmatprep.subr.mxu0 0.0
    %2020 = vmatpush1.msra.mxu0 0.0
    %2021 = vmatprep.subr.mxu0 0.0
    %2022 = vmatpush1.msra.mxu0 0.0
    %2023 = vmatprep.subr.mxu0 0.0
    %2024 = vmatpush1.msra.mxu0 0.0
    %2025 = vmatprep.subr.mxu0 0.0
    %2026 = vmatpush1.msra.mxu0 0.0
    %2027 = vmatprep.subr.mxu0 0.0
    %2028 = vmatpush1.msra.mxu0 0.0
    %2029 = vmatprep.subr.mxu0 0.0
    %2030 = vmatpush1.msra.mxu0 0.0
    %2031 = vmatprep.subr.mxu0 0.0
    %2032 = vmatpush1.msra.mxu0 0.0
    %2033 = vmatprep.subr.mxu0 0.0
    %2034 = vmatpush1.msra.mxu0 0.0
    %2035 = vmatprep.subr.mxu0 0.0
    %2036 = vmatpush1.msra.mxu0 0.0
    %2037 = vmatprep.subr.mxu0 0.0
    %2038 = vmatpush1.msra.mxu0 0.0
    %2039 = vmatprep.subr.mxu0 0.0
    %2040 = vmatpush1.msra.mxu0 0.0
    %2041 = vmatprep.mubr.f32.mxu0 0.0
    %2042 = vmatmul.mubr.f32.gmra.mrb[0].mxu0 %v1975
    %v2043 = vpop.f32.mrb[0].mxu0
    %v2044 = vadd.f32 %v1971, %v2043
    %v2045 = vpop.f32.mrb[0].mxu0
    %2046 = vdwg.mxu0
    %vm2047 = vcmask 74752
    %2048 = vst.msk [vmem:[#allocation2] sm:$0x3] %vm2047, %v2044
    // Predicated region
    $region54: #{lenet5_forward.1} parent=1 // pred_check
      _
    $region55: #{lenet5_forward.1} parent=1 // pred_check_branch
      %2050 = sbr.rel (0) target = $region57
    $region56: #{lenet5_forward.1} parent=1 // pred_region
      %s2052 = ssub.s32 32, 32
      %2053 = vsyncadd [#allocation3], %s2052
      %s2055 = sshll.u32 [#allocation2], 4
      %s2056 = int_to_ptr.vmem [resolvable:$true] %s2055
      %2058 = dma.vmem_to_hbm [thread:$0]  %s2056, 32, %s13, [#allocation3]
    $region57: #{lenet5_forward.1} parent=1 // pred_fallthru
      _
    // Predicated region
    $region58: #{lenet5_forward.1} parent=1 // pred_check
      _
    $region59: #{lenet5_forward.1} parent=1 // pred_check_branch
      %2060 = sbr.rel (0) target = $region61
    $region60: #{lenet5_forward.1} parent=1 // pred_region
      %2061 = dma.done [#allocation3], 32
    $region61: #{lenet5_forward.1} parent=1 // pred_fallthru
      _
    %2062 = vsyncpa [#allocation3], 1

</llo_original>
